<compile_context>
chip_gen: v7x
topology: tpu7x:2x2x1
jax: 0.10.0
libtpu: 0.0.40
codegen_flags: <defaults>
</compile_context>

<pallas_src>
import functools

import numpy as np

import jax
import jax.numpy as jnp
from jax.experimental import pallas as pl
from jax.experimental.pallas import tpu as pltpu


def bilstm_chunk_kernel(T, gates_ref, lens_ref, whh_ref, out_ref, h_ref, c_ref):
    """Fused bidirectional LSTM recurrence over one time-chunk.

    gates_ref: (TC, B, 8H) f32 -- precomputed x@W_ih + b, lane layout
               [i_f, i_b, f_f, f_b, g_f, g_b, o_f, o_b] (each H wide); the
               backward-direction lanes at loop step t hold real time T-1-t.
    lens_ref:  (B, 1) int32 sequence lengths.
    whh_ref:   (2H, 8H) f32 block-diagonal recurrent weights,
               rows = [h_f (H) ; h_b (H)], columns in the same lane layout.
    out_ref:   (TC, B, 2H) f32 -- [fwd(t) | bwd(T-1-t)] per step.
    h_ref/c_ref: (B, 2H) f32 VMEM scratch carrying state across chunks.
    """
    TC, B, G8 = gates_ref.shape
    H2 = G8 // 4          # 2H  (combined fwd||bwd state width)
    H = H2 // 2

    @pl.when(pl.program_id(0) == 0)
    def _():
        h_ref[...] = jnp.zeros_like(h_ref)
        c_ref[...] = jnp.zeros_like(c_ref)

    # ---- loop-invariant hoists (JAX does not CSE broadcasts) ----
    whh = whh_ref[...]                                            # (2H, 8H)
    lens_b = jnp.broadcast_to(lens_ref[...], (B, H2))             # (B, 2H) int32
    lane2 = jax.lax.broadcasted_iota(jnp.int32, (B, H2), 1)
    is_fwd = lane2 < H                                            # fwd vs bwd lanes
    base = pl.program_id(0) * TC                                  # global chunk offset

    def body(t, carry):
        h, c = carry                                              # (B, 2H) each, in vregs
        # single fused recurrent matmul for both directions
        gates = gates_ref[t] + jnp.dot(
            h, whh, preferred_element_type=jnp.float32)           # (B, 8H)
        # contiguous-lane gate activations (EUP)
        sig_if = jax.nn.sigmoid(gates[:, : 2 * H2])
        i = sig_if[:, :H2]
        f = sig_if[:, H2:]
        g = jnp.tanh(gates[:, 2 * H2:3 * H2])
        o = jax.nn.sigmoid(gates[:, 3 * H2:])
        c_new = f * c + i * g
        h_new = o * jnp.tanh(c_new)

        # packed-sequence masking: fwd lanes valid iff t_glob < L_b,
        # bwd lanes (real time T-1-t_glob) valid iff 0 <= T-1-t_glob < L_b
        # (the >= 0 term only matters for padded chunk tail steps).
        t_glob = base + t
        t_eff = jnp.where(is_fwd, t_glob, T - 1 - t_glob)         # (B, 2H) int32
        m = (t_eff >= 0) & (t_eff < lens_b)                       # (B, 2H) bool

        out_ref[t] = jnp.where(m, h_new, 0.0).astype(out_ref.dtype)
        h = jnp.where(m, h_new, h)                                # freeze state when invalid
        c = jnp.where(m, c_new, c)
        return (h, c)

    h, c = jax.lax.fori_loop(0, TC, body, (h_ref[...], c_ref[...]), unroll=True)
    h_ref[...] = h
    c_ref[...] = c


def text_encoder_pallas(x, length, params, *, chunk=16):
    """x: (B, T, Din), length: (B, 1) int.  Returns full (B, T, 2H)."""
    B, T, Din = x.shape
    H = params["whh_f"].shape[0]
    x = x.astype(jnp.float32)
    lens = jnp.asarray(length, jnp.int32).reshape(B, 1)

    # ---- fuse both directions' input projections into ONE big matmul:
    #      interleave columns of W_ih / bias ONCE (tiny weights, not the
    #      (T,B,*) activations) -> lane layout [i_f,i_b,f_f,f_b,g_f,g_b,o_f,o_b]
    def interleave_cols(wf, wb):
        r = wf.shape[0]
        wf = wf.reshape(r, 4, 1, H)
        wb = wb.reshape(r, 4, 1, H)
        return jnp.concatenate([wf, wb], axis=2).reshape(r, 8 * H)

    w_big = interleave_cols(params["wih_f"], params["wih_b"])     # (Din, 8H)
    b_big = interleave_cols(params["b_f"], params["b_b"])         # (1, 8H)

    # batch-first -> time-major folded into the einsum output layout
    gates = jnp.einsum("btd,dg->tbg", x, w_big) + b_big           # (T, B, 8H)

    # bwd lanes at loop step t must hold real time T-1-t: time-reverse them
    lane = jnp.arange(8 * H)
    is_bwd = (lane % (2 * H)) >= H
    gates = jnp.where(is_bwd[None, None, :], gates[::-1], gates)

    # ---- block-diagonal recurrent weight (built once): (2H, 8H) ----
    wf = params["whh_f"].reshape(H, 4, H)       # (H, gate, H), gate order i,f,g,o
    wb = params["whh_b"].reshape(H, 4, H)
    zeros = jnp.zeros_like(wf)
    top = jnp.stack([wf, zeros], axis=2)        # h_f rows feed fwd lanes only
    bot = jnp.stack([zeros, wb], axis=2)        # h_b rows feed bwd lanes only
    whh_big = jnp.concatenate([top, bot], axis=0).reshape(2 * H, 8 * H)

    # ---- time chunking (stream gates/out via BlockSpec auto-pipelining) ----
    TC = T if T <= 32 else chunk
    n_chunks = -(-T // TC)
    T_pad = n_chunks * TC
    if T_pad != T:
        gates = jnp.pad(gates, ((0, T_pad - T), (0, 0), (0, 0)))

    kernel = functools.partial(bilstm_chunk_kernel, T)
    out = pl.pallas_call(
        kernel,
        out_shape=jax.ShapeDtypeStruct((T_pad, B, 2 * H), jnp.float32),
        grid_spec=pltpu.PrefetchScalarGridSpec(
            num_scalar_prefetch=0,
            grid=(n_chunks,),
            in_specs=[
                pl.BlockSpec((TC, B, 8 * H), lambda i: (i, 0, 0)),   # gates stream
                pl.BlockSpec((B, 1), lambda i: (0, 0)),              # lens (resident)
                pl.BlockSpec((2 * H, 8 * H), lambda i: (0, 0)),      # W_hh (resident)
            ],
            out_specs=pl.BlockSpec((TC, B, 2 * H), lambda i: (i, 0, 0)),
            scratch_shapes=[
                pltpu.VMEM((B, 2 * H), jnp.float32),                 # h carry
                pltpu.VMEM((B, 2 * H), jnp.float32),                 # c carry
            ],
        ),
        compiler_params=pltpu.CompilerParams(
            dimension_semantics=("arbitrary",)),                     # serial recurrence
    )(gates, lens, whh_big)

    # backward half was stored time-reversed (lane-dense single store per step)
    out = out[:T]
    out_f = out[:, :, :H]                        # (T, B, H), fwd at time t
    out_b = out[::-1, :, H:]                     # (T, B, H), bwd at time t
    full = jnp.concatenate([out_f, out_b], axis=-1)   # (T, B, 2H)
    return jnp.transpose(full, (1, 0, 2))             # (B, T, 2H)


def text_encoder(x, length, params):
    """Full TextEncoder.forward: pad_packed_sequence trims to max(length)."""
    out_full = text_encoder_pallas(x, length, params)
    # Trim length computed host-side (no device-sync inside a jitted wrapper;
    # under jit, return out_full and trim outside instead).
    t_out = int(np.max(np.asarray(length)))
    return out_full[:, :t_out, :]


def text_encoder_ref(x, length, params):
    """Pure-JAX reference with identical packed-sequence semantics."""
    B, T, Din = x.shape
    H = params["whh_f"].shape[0]
    lens = jnp.asarray(length, jnp.int32).reshape(B, 1)

    def cell(x_t, h, c, wih, whh, b):
        gates = x_t @ wih + h @ whh + b
        i = jax.nn.sigmoid(gates[:, :H])
        f = jax.nn.sigmoid(gates[:, H:2 * H])
        g = jnp.tanh(gates[:, 2 * H:3 * H])
        o = jax.nn.sigmoid(gates[:, 3 * H:])
        c2 = f * c + i * g
        return o * jnp.tanh(c2), c2

    h = jnp.zeros((B, H)); c = jnp.zeros((B, H))
    out_f = []
    for t in range(T):
        hn, cn = cell(x[:, t], h, c, params["wih_f"], params["whh_f"], params["b_f"])
        m = t < lens
        h = jnp.where(m, hn, h); c = jnp.where(m, cn, c)
        out_f.append(jnp.where(m, hn, 0.0))

    h = jnp.zeros((B, H)); c = jnp.zeros((B, H))
    out_b = [None] * T
    for t in range(T - 1, -1, -1):
        hn, cn = cell(x[:, t], h, c, params["wih_b"], params["whh_b"], params["b_b"])
        m = t < lens
        h = jnp.where(m, hn, h); c = jnp.where(m, cn, c)
        out_b[t] = jnp.where(m, hn, 0.0)

    out = jnp.concatenate([jnp.stack(out_f, 1), jnp.stack(out_b, 1)], axis=-1)
    t_out = int(np.max(np.asarray(length)))
    return out[:, :t_out, :]


def init_params(key, input_size, hidden_size):
    """Deterministic init matching PyTorch LSTM parameter shapes (transposed)."""
    k = 1.0 / jnp.sqrt(hidden_size)
    keys = jax.random.split(key, 8)
    u = lambda kk, shape: jax.random.uniform(kk, shape, jnp.float32, -k, k)
    H4 = 4 * hidden_size
    return {
        # forward direction (weight_ih_l0.T, weight_hh_l0.T, bias_ih + bias_hh)
        "wih_f": u(keys[0], (input_size, H4)),
        "whh_f": u(keys[1], (hidden_size, H4)),
        "b_f":   u(keys[2], (1, H4)) + u(keys[3], (1, H4)),
        # reverse direction
        "wih_b": u(keys[4], (input_size, H4)),
        "whh_b": u(keys[5], (hidden_size, H4)),
        "b_b":   u(keys[6], (1, H4)) + u(keys[7], (1, H4)),
    }


if __name__ == "__main__":
    B, T, INPUT_SIZE, HIDDEN = 2, 8, 16, 32

    key = jax.random.PRNGKey(0)
    kx, kp = jax.random.split(key)
    x = jax.random.normal(kx, (B, T, INPUT_SIZE), jnp.float32)
    length = jnp.array([[T], [5]], jnp.int32)          # (B, 1), max == T
    params = init_params(kp, INPUT_SIZE, HIDDEN)

    out = text_encoder(x, length, params)
    out = jax.block_until_ready(out)

    ref = text_encoder_ref(x, length, params)
    assert out.shape == (B, int(np.max(np.asarray(length))), 2 * HIDDEN), out.shape
    assert jnp.allclose(out, ref, atol=5e-5, rtol=5e-5), "mismatch vs reference"

    print("KERNEL_OK")
</pallas_src>

<mosaic_0001>
module attributes {stable_mosaic.version = 11 : i64} {
  func.func @bilstm_chunk_kernel(%arg0: i32, %arg1: memref<8x2x256xf32, #tpu.memory_space<vmem>>, %arg2: memref<2x1xi32, #tpu.memory_space<vmem>>, %arg3: memref<64x256xf32, #tpu.memory_space<vmem>>, %arg4: memref<8x2x64xf32, #tpu.memory_space<vmem>>, %arg5: memref<2x64xf32, #tpu.memory_space<vmem>>, %arg6: memref<2x64xf32, #tpu.memory_space<vmem>>) attributes {dimension_semantics = [#tpu.dimension_semantics<arbitrary>], iteration_bounds = array<i64: 1>, scalar_prefetch = 0 : i64, scratch_operands = 2 : i64, tpu.core_type = #tpu.core_type<tc>, window_params = [{transform_indices = @transform_0, window_bounds = array<i64: 8, 2, 256>}, {pipeline_mode = #tpu.pipeline_mode<synchronous>, transform_indices = @transform_1, window_bounds = array<i64: 2, 1>}, {pipeline_mode = #tpu.pipeline_mode<synchronous>, transform_indices = @transform_2, window_bounds = array<i64: 64, 256>}, {transform_indices = @transform_3, window_bounds = array<i64: 8, 2, 64>}]} {
    %c0_i32 = arith.constant 0 : i32
    %0 = arith.cmpi eq, %arg0, %c0_i32 : i32
    %1 = arith.extui %0 : i1 to i32
    %c0_i32_0 = arith.constant 0 : i32
    %2 = arith.cmpi ne, %1, %c0_i32_0 : i32
    scf.if %2 {
      %cst_93 = arith.constant 0.000000e+00 : f32
      %359 = vector.broadcast %cst_93 : f32 to vector<2x64xf32>
      %c0_94 = arith.constant 0 : index
      %c0_95 = arith.constant 0 : index
      %360 = vector.load %arg5[%c0_94, %c0_95] : memref<2x64xf32, #tpu.memory_space<vmem>>, vector<2x64xf32>
      tpu.vector_store %arg5[%c0_94, %c0_95], %359 {strides = array<i32>} : memref<2x64xf32, #tpu.memory_space<vmem>>, vector<2x64xf32>,
      %cst_96 = arith.constant 0.000000e+00 : f32
      %361 = vector.broadcast %cst_96 : f32 to vector<2x64xf32>
      %c0_97 = arith.constant 0 : index
      %c0_98 = arith.constant 0 : index
      %362 = vector.load %arg6[%c0_97, %c0_98] : memref<2x64xf32, #tpu.memory_space<vmem>>, vector<2x64xf32>
      tpu.vector_store %arg6[%c0_97, %c0_98], %361 {strides = array<i32>} : memref<2x64xf32, #tpu.memory_space<vmem>>, vector<2x64xf32>,
    } else {
    }
    %c0 = arith.constant 0 : index
    %c0_1 = arith.constant 0 : index
    %3 = vector.load %arg3[%c0, %c0_1] : memref<64x256xf32, #tpu.memory_space<vmem>>, vector<64x256xf32>
    %c0_2 = arith.constant 0 : index
    %c0_3 = arith.constant 0 : index
    %4 = vector.load %arg2[%c0_2, %c0_3] : memref<2x1xi32, #tpu.memory_space<vmem>>, vector<2x1xi32>
    %5 = vector.shape_cast %4 : vector<2x1xi32> to vector<2x1xi32>
    %6 = vector.broadcast %5 : vector<2x1xi32> to vector<2x64xi32>
    %7 = tpu.iota {dimensions = array<i32: 1>} : vector<2x64xi32>
    %c32_i32 = arith.constant 32 : i32
    %8 = vector.broadcast %c32_i32 : i32 to vector<2x64xi32>
    %9 = arith.cmpi slt, %7, %8 : vector<2x64xi32>
    %c8_i32 = arith.constant 8 : i32
    %10 = arith.muli %arg0, %c8_i32 : i32
    %c0_4 = arith.constant 0 : index
    %c0_5 = arith.constant 0 : index
    %11 = vector.load %arg5[%c0_4, %c0_5] : memref<2x64xf32, #tpu.memory_space<vmem>>, vector<2x64xf32>
    %c0_6 = arith.constant 0 : index
    %c0_7 = arith.constant 0 : index
    %12 = vector.load %arg6[%c0_6, %c0_7] : memref<2x64xf32, #tpu.memory_space<vmem>>, vector<2x64xf32>
    %c0_i32_8 = arith.constant 0 : i32
    %13 = arith.index_cast %c0_i32_8 : i32 to index
    %c0_9 = arith.constant 0 : index
    %c0_10 = arith.constant 0 : index
    %14 = vector.load %arg1[%13, %c0_9, %c0_10] : memref<8x2x256xf32, #tpu.memory_space<vmem>>, vector<1x2x256xf32>
    %15 = vector.shape_cast %14 : vector<1x2x256xf32> to vector<2x256xf32>
    %cst = arith.constant dense<0.000000e+00> : vector<2x256xf32>
    %16 = tpu.matmul %11, %3, %cst {dimension_numbers = #tpu.dot_dimension_numbers<[1], [0], [0], [1], [0, 0, 1, 1], [], []>} : vector<2x64xf32>, vector<64x256xf32>, vector<2x256xf32> -> vector<2x256xf32>
    %17 = arith.addf %15, %16 : vector<2x256xf32>
    %18 = vector.extract_strided_slice %17 {offsets = [0, 0], sizes = [2, 128], strides = [1, 1]} : vector<2x256xf32> to vector<2x128xf32>
    %19 = arith.negf %18 : vector<2x128xf32>
    %20 = math.exp %19 : vector<2x128xf32>
    %cst_11 = arith.constant 1.000000e+00 : f32
    %21 = vector.broadcast %cst_11 : f32 to vector<2x128xf32>
    %22 = arith.addf %21, %20 : vector<2x128xf32>
    %23 = arith.divf %21, %22 : vector<2x128xf32>
    %24 = vector.extract_strided_slice %23 {offsets = [0, 0], sizes = [2, 64], strides = [1, 1]} : vector<2x128xf32> to vector<2x64xf32>
    %25 = vector.extract_strided_slice %23 {offsets = [0, 64], sizes = [2, 64], strides = [1, 1]} : vector<2x128xf32> to vector<2x64xf32>
    %26 = vector.extract_strided_slice %17 {offsets = [0, 128], sizes = [2, 64], strides = [1, 1]} : vector<2x256xf32> to vector<2x64xf32>
    %27 = math.tanh %26 : vector<2x64xf32>
    %28 = vector.extract_strided_slice %17 {offsets = [0, 192], sizes = [2, 64], strides = [1, 1]} : vector<2x256xf32> to vector<2x64xf32>
    %29 = arith.negf %28 : vector<2x64xf32>
    %30 = math.exp %29 : vector<2x64xf32>
    %cst_12 = arith.constant 1.000000e+00 : f32
    %31 = vector.broadcast %cst_12 : f32 to vector<2x64xf32>
    %32 = arith.addf %31, %30 : vector<2x64xf32>
    %33 = arith.divf %31, %32 : vector<2x64xf32>
    %34 = arith.mulf %25, %12 : vector<2x64xf32>
    %35 = arith.mulf %24, %27 : vector<2x64xf32>
    %36 = arith.addf %34, %35 : vector<2x64xf32>
    %37 = math.tanh %36 : vector<2x64xf32>
    %38 = arith.mulf %33, %37 : vector<2x64xf32>
    %39 = arith.addi %10, %c0_i32_8 : i32
    %c7_i32 = arith.constant 7 : i32
    %40 = arith.subi %c7_i32, %39 : i32
    %41 = vector.broadcast %39 : i32 to vector<2x64xi32>
    %42 = vector.broadcast %40 : i32 to vector<2x64xi32>
    %43 = arith.select %9, %41, %42 : vector<2x64xi1>, vector<2x64xi32>
    %c0_i32_13 = arith.constant 0 : i32
    %44 = vector.broadcast %c0_i32_13 : i32 to vector<2x64xi32>
    %45 = arith.cmpi sge, %43, %44 : vector<2x64xi32>
    %46 = arith.cmpi slt, %43, %6 : vector<2x64xi32>
    %47 = arith.andi %45, %46 : vector<2x64xi1>
    %cst_14 = arith.constant 0.000000e+00 : f32
    %48 = vector.broadcast %cst_14 : f32 to vector<2x64xf32>
    %49 = arith.select %47, %38, %48 : vector<2x64xi1>, vector<2x64xf32>
    %50 = arith.index_cast %c0_i32_8 : i32 to index
    %c0_15 = arith.constant 0 : index
    %c0_16 = arith.constant 0 : index
    %51 = vector.load %arg4[%50, %c0_15, %c0_16] : memref<8x2x64xf32, #tpu.memory_space<vmem>>, vector<1x2x64xf32>
    %52 = vector.shape_cast %51 : vector<1x2x64xf32> to vector<2x64xf32>
    %53 = vector.shape_cast %49 : vector<2x64xf32> to vector<1x2x64xf32>
    tpu.vector_store %arg4[%50, %c0_15, %c0_16], %53 {strides = array<i32>} : memref<8x2x64xf32, #tpu.memory_space<vmem>>, vector<1x2x64xf32>,
    %54 = arith.select %47, %38, %11 : vector<2x64xi1>, vector<2x64xf32>
    %55 = arith.select %47, %36, %12 : vector<2x64xi1>, vector<2x64xf32>
    %c1_i32 = arith.constant 1 : i32
    %56 = arith.index_cast %c1_i32 : i32 to index
    %c0_17 = arith.constant 0 : index
    %c0_18 = arith.constant 0 : index
    %57 = vector.load %arg1[%56, %c0_17, %c0_18] : memref<8x2x256xf32, #tpu.memory_space<vmem>>, vector<1x2x256xf32>
    %58 = vector.shape_cast %57 : vector<1x2x256xf32> to vector<2x256xf32>
    %cst_19 = arith.constant dense<0.000000e+00> : vector<2x256xf32>
    %59 = tpu.matmul %54, %3, %cst_19 {dimension_numbers = #tpu.dot_dimension_numbers<[1], [0], [0], [1], [0, 0, 1, 1], [], []>} : vector<2x64xf32>, vector<64x256xf32>, vector<2x256xf32> -> vector<2x256xf32>
    %60 = arith.addf %58, %59 : vector<2x256xf32>
    %61 = vector.extract_strided_slice %60 {offsets = [0, 0], sizes = [2, 128], strides = [1, 1]} : vector<2x256xf32> to vector<2x128xf32>
    %62 = arith.negf %61 : vector<2x128xf32>
    %63 = math.exp %62 : vector<2x128xf32>
    %cst_20 = arith.constant 1.000000e+00 : f32
    %64 = vector.broadcast %cst_20 : f32 to vector<2x128xf32>
    %65 = arith.addf %64, %63 : vector<2x128xf32>
    %66 = arith.divf %64, %65 : vector<2x128xf32>
    %67 = vector.extract_strided_slice %66 {offsets = [0, 0], sizes = [2, 64], strides = [1, 1]} : vector<2x128xf32> to vector<2x64xf32>
    %68 = vector.extract_strided_slice %66 {offsets = [0, 64], sizes = [2, 64], strides = [1, 1]} : vector<2x128xf32> to vector<2x64xf32>
    %69 = vector.extract_strided_slice %60 {offsets = [0, 128], sizes = [2, 64], strides = [1, 1]} : vector<2x256xf32> to vector<2x64xf32>
    %70 = math.tanh %69 : vector<2x64xf32>
    %71 = vector.extract_strided_slice %60 {offsets = [0, 192], sizes = [2, 64], strides = [1, 1]} : vector<2x256xf32> to vector<2x64xf32>
    %72 = arith.negf %71 : vector<2x64xf32>
    %73 = math.exp %72 : vector<2x64xf32>
    %cst_21 = arith.constant 1.000000e+00 : f32
    %74 = vector.broadcast %cst_21 : f32 to vector<2x64xf32>
    %75 = arith.addf %74, %73 : vector<2x64xf32>
    %76 = arith.divf %74, %75 : vector<2x64xf32>
    %77 = arith.mulf %68, %55 : vector<2x64xf32>
    %78 = arith.mulf %67, %70 : vector<2x64xf32>
    %79 = arith.addf %77, %78 : vector<2x64xf32>
    %80 = math.tanh %79 : vector<2x64xf32>
    %81 = arith.mulf %76, %80 : vector<2x64xf32>
    %82 = arith.addi %10, %c1_i32 : i32
    %c7_i32_22 = arith.constant 7 : i32
    %83 = arith.subi %c7_i32_22, %82 : i32
    %84 = vector.broadcast %82 : i32 to vector<2x64xi32>
    %85 = vector.broadcast %83 : i32 to vector<2x64xi32>
    %86 = arith.select %9, %84, %85 : vector<2x64xi1>, vector<2x64xi32>
    %c0_i32_23 = arith.constant 0 : i32
    %87 = vector.broadcast %c0_i32_23 : i32 to vector<2x64xi32>
    %88 = arith.cmpi sge, %86, %87 : vector<2x64xi32>
    %89 = arith.cmpi slt, %86, %6 : vector<2x64xi32>
    %90 = arith.andi %88, %89 : vector<2x64xi1>
    %cst_24 = arith.constant 0.000000e+00 : f32
    %91 = vector.broadcast %cst_24 : f32 to vector<2x64xf32>
    %92 = arith.select %90, %81, %91 : vector<2x64xi1>, vector<2x64xf32>
    %93 = arith.index_cast %c1_i32 : i32 to index
    %c0_25 = arith.constant 0 : index
    %c0_26 = arith.constant 0 : index
    %94 = vector.load %arg4[%93, %c0_25, %c0_26] : memref<8x2x64xf32, #tpu.memory_space<vmem>>, vector<1x2x64xf32>
    %95 = vector.shape_cast %94 : vector<1x2x64xf32> to vector<2x64xf32>
    %96 = vector.shape_cast %92 : vector<2x64xf32> to vector<1x2x64xf32>
    tpu.vector_store %arg4[%93, %c0_25, %c0_26], %96 {strides = array<i32>} : memref<8x2x64xf32, #tpu.memory_space<vmem>>, vector<1x2x64xf32>,
    %97 = arith.select %90, %81, %54 : vector<2x64xi1>, vector<2x64xf32>
    %98 = arith.select %90, %79, %55 : vector<2x64xi1>, vector<2x64xf32>
    %c2_i32 = arith.constant 2 : i32
    %99 = arith.index_cast %c2_i32 : i32 to index
    %c0_27 = arith.constant 0 : index
    %c0_28 = arith.constant 0 : index
    %100 = vector.load %arg1[%99, %c0_27, %c0_28] : memref<8x2x256xf32, #tpu.memory_space<vmem>>, vector<1x2x256xf32>
    %101 = vector.shape_cast %100 : vector<1x2x256xf32> to vector<2x256xf32>
    %cst_29 = arith.constant dense<0.000000e+00> : vector<2x256xf32>
    %102 = tpu.matmul %97, %3, %cst_29 {dimension_numbers = #tpu.dot_dimension_numbers<[1], [0], [0], [1], [0, 0, 1, 1], [], []>} : vector<2x64xf32>, vector<64x256xf32>, vector<2x256xf32> -> vector<2x256xf32>
    %103 = arith.addf %101, %102 : vector<2x256xf32>
    %104 = vector.extract_strided_slice %103 {offsets = [0, 0], sizes = [2, 128], strides = [1, 1]} : vector<2x256xf32> to vector<2x128xf32>
    %105 = arith.negf %104 : vector<2x128xf32>
    %106 = math.exp %105 : vector<2x128xf32>
    %cst_30 = arith.constant 1.000000e+00 : f32
    %107 = vector.broadcast %cst_30 : f32 to vector<2x128xf32>
    %108 = arith.addf %107, %106 : vector<2x128xf32>
    %109 = arith.divf %107, %108 : vector<2x128xf32>
    %110 = vector.extract_strided_slice %109 {offsets = [0, 0], sizes = [2, 64], strides = [1, 1]} : vector<2x128xf32> to vector<2x64xf32>
    %111 = vector.extract_strided_slice %109 {offsets = [0, 64], sizes = [2, 64], strides = [1, 1]} : vector<2x128xf32> to vector<2x64xf32>
    %112 = vector.extract_strided_slice %103 {offsets = [0, 128], sizes = [2, 64], strides = [1, 1]} : vector<2x256xf32> to vector<2x64xf32>
    %113 = math.tanh %112 : vector<2x64xf32>
    %114 = vector.extract_strided_slice %103 {offsets = [0, 192], sizes = [2, 64], strides = [1, 1]} : vector<2x256xf32> to vector<2x64xf32>
    %115 = arith.negf %114 : vector<2x64xf32>
    %116 = math.exp %115 : vector<2x64xf32>
    %cst_31 = arith.constant 1.000000e+00 : f32
    %117 = vector.broadcast %cst_31 : f32 to vector<2x64xf32>
    %118 = arith.addf %117, %116 : vector<2x64xf32>
    %119 = arith.divf %117, %118 : vector<2x64xf32>
    %120 = arith.mulf %111, %98 : vector<2x64xf32>
    %121 = arith.mulf %110, %113 : vector<2x64xf32>
    %122 = arith.addf %120, %121 : vector<2x64xf32>
    %123 = math.tanh %122 : vector<2x64xf32>
    %124 = arith.mulf %119, %123 : vector<2x64xf32>
    %125 = arith.addi %10, %c2_i32 : i32
    %c7_i32_32 = arith.constant 7 : i32
    %126 = arith.subi %c7_i32_32, %125 : i32
    %127 = vector.broadcast %125 : i32 to vector<2x64xi32>
    %128 = vector.broadcast %126 : i32 to vector<2x64xi32>
    %129 = arith.select %9, %127, %128 : vector<2x64xi1>, vector<2x64xi32>
    %c0_i32_33 = arith.constant 0 : i32
    %130 = vector.broadcast %c0_i32_33 : i32 to vector<2x64xi32>
    %131 = arith.cmpi sge, %129, %130 : vector<2x64xi32>
    %132 = arith.cmpi slt, %129, %6 : vector<2x64xi32>
    %133 = arith.andi %131, %132 : vector<2x64xi1>
    %cst_34 = arith.constant 0.000000e+00 : f32
    %134 = vector.broadcast %cst_34 : f32 to vector<2x64xf32>
    %135 = arith.select %133, %124, %134 : vector<2x64xi1>, vector<2x64xf32>
    %136 = arith.index_cast %c2_i32 : i32 to index
    %c0_35 = arith.constant 0 : index
    %c0_36 = arith.constant 0 : index
    %137 = vector.load %arg4[%136, %c0_35, %c0_36] : memref<8x2x64xf32, #tpu.memory_space<vmem>>, vector<1x2x64xf32>
    %138 = vector.shape_cast %137 : vector<1x2x64xf32> to vector<2x64xf32>
    %139 = vector.shape_cast %135 : vector<2x64xf32> to vector<1x2x64xf32>
    tpu.vector_store %arg4[%136, %c0_35, %c0_36], %139 {strides = array<i32>} : memref<8x2x64xf32, #tpu.memory_space<vmem>>, vector<1x2x64xf32>,
    %140 = arith.select %133, %124, %97 : vector<2x64xi1>, vector<2x64xf32>
    %141 = arith.select %133, %122, %98 : vector<2x64xi1>, vector<2x64xf32>
    %c3_i32 = arith.constant 3 : i32
    %142 = arith.index_cast %c3_i32 : i32 to index
    %c0_37 = arith.constant 0 : index
    %c0_38 = arith.constant 0 : index
    %143 = vector.load %arg1[%142, %c0_37, %c0_38] : memref<8x2x256xf32, #tpu.memory_space<vmem>>, vector<1x2x256xf32>
    %144 = vector.shape_cast %143 : vector<1x2x256xf32> to vector<2x256xf32>
    %cst_39 = arith.constant dense<0.000000e+00> : vector<2x256xf32>
    %145 = tpu.matmul %140, %3, %cst_39 {dimension_numbers = #tpu.dot_dimension_numbers<[1], [0], [0], [1], [0, 0, 1, 1], [], []>} : vector<2x64xf32>, vector<64x256xf32>, vector<2x256xf32> -> vector<2x256xf32>
    %146 = arith.addf %144, %145 : vector<2x256xf32>
    %147 = vector.extract_strided_slice %146 {offsets = [0, 0], sizes = [2, 128], strides = [1, 1]} : vector<2x256xf32> to vector<2x128xf32>
    %148 = arith.negf %147 : vector<2x128xf32>
    %149 = math.exp %148 : vector<2x128xf32>
    %cst_40 = arith.constant 1.000000e+00 : f32
    %150 = vector.broadcast %cst_40 : f32 to vector<2x128xf32>
    %151 = arith.addf %150, %149 : vector<2x128xf32>
    %152 = arith.divf %150, %151 : vector<2x128xf32>
    %153 = vector.extract_strided_slice %152 {offsets = [0, 0], sizes = [2, 64], strides = [1, 1]} : vector<2x128xf32> to vector<2x64xf32>
    %154 = vector.extract_strided_slice %152 {offsets = [0, 64], sizes = [2, 64], strides = [1, 1]} : vector<2x128xf32> to vector<2x64xf32>
    %155 = vector.extract_strided_slice %146 {offsets = [0, 128], sizes = [2, 64], strides = [1, 1]} : vector<2x256xf32> to vector<2x64xf32>
    %156 = math.tanh %155 : vector<2x64xf32>
    %157 = vector.extract_strided_slice %146 {offsets = [0, 192], sizes = [2, 64], strides = [1, 1]} : vector<2x256xf32> to vector<2x64xf32>
    %158 = arith.negf %157 : vector<2x64xf32>
    %159 = math.exp %158 : vector<2x64xf32>
    %cst_41 = arith.constant 1.000000e+00 : f32
    %160 = vector.broadcast %cst_41 : f32 to vector<2x64xf32>
    %161 = arith.addf %160, %159 : vector<2x64xf32>
    %162 = arith.divf %160, %161 : vector<2x64xf32>
    %163 = arith.mulf %154, %141 : vector<2x64xf32>
    %164 = arith.mulf %153, %156 : vector<2x64xf32>
    %165 = arith.addf %163, %164 : vector<2x64xf32>
    %166 = math.tanh %165 : vector<2x64xf32>
    %167 = arith.mulf %162, %166 : vector<2x64xf32>
    %168 = arith.addi %10, %c3_i32 : i32
    %c7_i32_42 = arith.constant 7 : i32
    %169 = arith.subi %c7_i32_42, %168 : i32
    %170 = vector.broadcast %168 : i32 to vector<2x64xi32>
    %171 = vector.broadcast %169 : i32 to vector<2x64xi32>
    %172 = arith.select %9, %170, %171 : vector<2x64xi1>, vector<2x64xi32>
    %c0_i32_43 = arith.constant 0 : i32
    %173 = vector.broadcast %c0_i32_43 : i32 to vector<2x64xi32>
    %174 = arith.cmpi sge, %172, %173 : vector<2x64xi32>
    %175 = arith.cmpi slt, %172, %6 : vector<2x64xi32>
    %176 = arith.andi %174, %175 : vector<2x64xi1>
    %cst_44 = arith.constant 0.000000e+00 : f32
    %177 = vector.broadcast %cst_44 : f32 to vector<2x64xf32>
    %178 = arith.select %176, %167, %177 : vector<2x64xi1>, vector<2x64xf32>
    %179 = arith.index_cast %c3_i32 : i32 to index
    %c0_45 = arith.constant 0 : index
    %c0_46 = arith.constant 0 : index
    %180 = vector.load %arg4[%179, %c0_45, %c0_46] : memref<8x2x64xf32, #tpu.memory_space<vmem>>, vector<1x2x64xf32>
    %181 = vector.shape_cast %180 : vector<1x2x64xf32> to vector<2x64xf32>
    %182 = vector.shape_cast %178 : vector<2x64xf32> to vector<1x2x64xf32>
    tpu.vector_store %arg4[%179, %c0_45, %c0_46], %182 {strides = array<i32>} : memref<8x2x64xf32, #tpu.memory_space<vmem>>, vector<1x2x64xf32>,
    %183 = arith.select %176, %167, %140 : vector<2x64xi1>, vector<2x64xf32>
    %184 = arith.select %176, %165, %141 : vector<2x64xi1>, vector<2x64xf32>
    %c4_i32 = arith.constant 4 : i32
    %185 = arith.index_cast %c4_i32 : i32 to index
    %c0_47 = arith.constant 0 : index
    %c0_48 = arith.constant 0 : index
    %186 = vector.load %arg1[%185, %c0_47, %c0_48] : memref<8x2x256xf32, #tpu.memory_space<vmem>>, vector<1x2x256xf32>
    %187 = vector.shape_cast %186 : vector<1x2x256xf32> to vector<2x256xf32>
    %cst_49 = arith.constant dense<0.000000e+00> : vector<2x256xf32>
    %188 = tpu.matmul %183, %3, %cst_49 {dimension_numbers = #tpu.dot_dimension_numbers<[1], [0], [0], [1], [0, 0, 1, 1], [], []>} : vector<2x64xf32>, vector<64x256xf32>, vector<2x256xf32> -> vector<2x256xf32>
    %189 = arith.addf %187, %188 : vector<2x256xf32>
    %190 = vector.extract_strided_slice %189 {offsets = [0, 0], sizes = [2, 128], strides = [1, 1]} : vector<2x256xf32> to vector<2x128xf32>
    %191 = arith.negf %190 : vector<2x128xf32>
    %192 = math.exp %191 : vector<2x128xf32>
    %cst_50 = arith.constant 1.000000e+00 : f32
    %193 = vector.broadcast %cst_50 : f32 to vector<2x128xf32>
    %194 = arith.addf %193, %192 : vector<2x128xf32>
    %195 = arith.divf %193, %194 : vector<2x128xf32>
    %196 = vector.extract_strided_slice %195 {offsets = [0, 0], sizes = [2, 64], strides = [1, 1]} : vector<2x128xf32> to vector<2x64xf32>
    %197 = vector.extract_strided_slice %195 {offsets = [0, 64], sizes = [2, 64], strides = [1, 1]} : vector<2x128xf32> to vector<2x64xf32>
    %198 = vector.extract_strided_slice %189 {offsets = [0, 128], sizes = [2, 64], strides = [1, 1]} : vector<2x256xf32> to vector<2x64xf32>
    %199 = math.tanh %198 : vector<2x64xf32>
    %200 = vector.extract_strided_slice %189 {offsets = [0, 192], sizes = [2, 64], strides = [1, 1]} : vector<2x256xf32> to vector<2x64xf32>
    %201 = arith.negf %200 : vector<2x64xf32>
    %202 = math.exp %201 : vector<2x64xf32>
    %cst_51 = arith.constant 1.000000e+00 : f32
    %203 = vector.broadcast %cst_51 : f32 to vector<2x64xf32>
    %204 = arith.addf %203, %202 : vector<2x64xf32>
    %205 = arith.divf %203, %204 : vector<2x64xf32>
    %206 = arith.mulf %197, %184 : vector<2x64xf32>
    %207 = arith.mulf %196, %199 : vector<2x64xf32>
    %208 = arith.addf %206, %207 : vector<2x64xf32>
    %209 = math.tanh %208 : vector<2x64xf32>
    %210 = arith.mulf %205, %209 : vector<2x64xf32>
    %211 = arith.addi %10, %c4_i32 : i32
    %c7_i32_52 = arith.constant 7 : i32
    %212 = arith.subi %c7_i32_52, %211 : i32
    %213 = vector.broadcast %211 : i32 to vector<2x64xi32>
    %214 = vector.broadcast %212 : i32 to vector<2x64xi32>
    %215 = arith.select %9, %213, %214 : vector<2x64xi1>, vector<2x64xi32>
    %c0_i32_53 = arith.constant 0 : i32
    %216 = vector.broadcast %c0_i32_53 : i32 to vector<2x64xi32>
    %217 = arith.cmpi sge, %215, %216 : vector<2x64xi32>
    %218 = arith.cmpi slt, %215, %6 : vector<2x64xi32>
    %219 = arith.andi %217, %218 : vector<2x64xi1>
    %cst_54 = arith.constant 0.000000e+00 : f32
    %220 = vector.broadcast %cst_54 : f32 to vector<2x64xf32>
    %221 = arith.select %219, %210, %220 : vector<2x64xi1>, vector<2x64xf32>
    %222 = arith.index_cast %c4_i32 : i32 to index
    %c0_55 = arith.constant 0 : index
    %c0_56 = arith.constant 0 : index
    %223 = vector.load %arg4[%222, %c0_55, %c0_56] : memref<8x2x64xf32, #tpu.memory_space<vmem>>, vector<1x2x64xf32>
    %224 = vector.shape_cast %223 : vector<1x2x64xf32> to vector<2x64xf32>
    %225 = vector.shape_cast %221 : vector<2x64xf32> to vector<1x2x64xf32>
    tpu.vector_store %arg4[%222, %c0_55, %c0_56], %225 {strides = array<i32>} : memref<8x2x64xf32, #tpu.memory_space<vmem>>, vector<1x2x64xf32>,
    %226 = arith.select %219, %210, %183 : vector<2x64xi1>, vector<2x64xf32>
    %227 = arith.select %219, %208, %184 : vector<2x64xi1>, vector<2x64xf32>
    %c5_i32 = arith.constant 5 : i32
    %228 = arith.index_cast %c5_i32 : i32 to index
    %c0_57 = arith.constant 0 : index
    %c0_58 = arith.constant 0 : index
    %229 = vector.load %arg1[%228, %c0_57, %c0_58] : memref<8x2x256xf32, #tpu.memory_space<vmem>>, vector<1x2x256xf32>
    %230 = vector.shape_cast %229 : vector<1x2x256xf32> to vector<2x256xf32>
    %cst_59 = arith.constant dense<0.000000e+00> : vector<2x256xf32>
    %231 = tpu.matmul %226, %3, %cst_59 {dimension_numbers = #tpu.dot_dimension_numbers<[1], [0], [0], [1], [0, 0, 1, 1], [], []>} : vector<2x64xf32>, vector<64x256xf32>, vector<2x256xf32> -> vector<2x256xf32>
    %232 = arith.addf %230, %231 : vector<2x256xf32>
    %233 = vector.extract_strided_slice %232 {offsets = [0, 0], sizes = [2, 128], strides = [1, 1]} : vector<2x256xf32> to vector<2x128xf32>
    %234 = arith.negf %233 : vector<2x128xf32>
    %235 = math.exp %234 : vector<2x128xf32>
    %cst_60 = arith.constant 1.000000e+00 : f32
    %236 = vector.broadcast %cst_60 : f32 to vector<2x128xf32>
    %237 = arith.addf %236, %235 : vector<2x128xf32>
    %238 = arith.divf %236, %237 : vector<2x128xf32>
    %239 = vector.extract_strided_slice %238 {offsets = [0, 0], sizes = [2, 64], strides = [1, 1]} : vector<2x128xf32> to vector<2x64xf32>
    %240 = vector.extract_strided_slice %238 {offsets = [0, 64], sizes = [2, 64], strides = [1, 1]} : vector<2x128xf32> to vector<2x64xf32>
    %241 = vector.extract_strided_slice %232 {offsets = [0, 128], sizes = [2, 64], strides = [1, 1]} : vector<2x256xf32> to vector<2x64xf32>
    %242 = math.tanh %241 : vector<2x64xf32>
    %243 = vector.extract_strided_slice %232 {offsets = [0, 192], sizes = [2, 64], strides = [1, 1]} : vector<2x256xf32> to vector<2x64xf32>
    %244 = arith.negf %243 : vector<2x64xf32>
    %245 = math.exp %244 : vector<2x64xf32>
    %cst_61 = arith.constant 1.000000e+00 : f32
    %246 = vector.broadcast %cst_61 : f32 to vector<2x64xf32>
    %247 = arith.addf %246, %245 : vector<2x64xf32>
    %248 = arith.divf %246, %247 : vector<2x64xf32>
    %249 = arith.mulf %240, %227 : vector<2x64xf32>
    %250 = arith.mulf %239, %242 : vector<2x64xf32>
    %251 = arith.addf %249, %250 : vector<2x64xf32>
    %252 = math.tanh %251 : vector<2x64xf32>
    %253 = arith.mulf %248, %252 : vector<2x64xf32>
    %254 = arith.addi %10, %c5_i32 : i32
    %c7_i32_62 = arith.constant 7 : i32
    %255 = arith.subi %c7_i32_62, %254 : i32
    %256 = vector.broadcast %254 : i32 to vector<2x64xi32>
    %257 = vector.broadcast %255 : i32 to vector<2x64xi32>
    %258 = arith.select %9, %256, %257 : vector<2x64xi1>, vector<2x64xi32>
    %c0_i32_63 = arith.constant 0 : i32
    %259 = vector.broadcast %c0_i32_63 : i32 to vector<2x64xi32>
    %260 = arith.cmpi sge, %258, %259 : vector<2x64xi32>
    %261 = arith.cmpi slt, %258, %6 : vector<2x64xi32>
    %262 = arith.andi %260, %261 : vector<2x64xi1>
    %cst_64 = arith.constant 0.000000e+00 : f32
    %263 = vector.broadcast %cst_64 : f32 to vector<2x64xf32>
    %264 = arith.select %262, %253, %263 : vector<2x64xi1>, vector<2x64xf32>
    %265 = arith.index_cast %c5_i32 : i32 to index
    %c0_65 = arith.constant 0 : index
    %c0_66 = arith.constant 0 : index
    %266 = vector.load %arg4[%265, %c0_65, %c0_66] : memref<8x2x64xf32, #tpu.memory_space<vmem>>, vector<1x2x64xf32>
    %267 = vector.shape_cast %266 : vector<1x2x64xf32> to vector<2x64xf32>
    %268 = vector.shape_cast %264 : vector<2x64xf32> to vector<1x2x64xf32>
    tpu.vector_store %arg4[%265, %c0_65, %c0_66], %268 {strides = array<i32>} : memref<8x2x64xf32, #tpu.memory_space<vmem>>, vector<1x2x64xf32>,
    %269 = arith.select %262, %253, %226 : vector<2x64xi1>, vector<2x64xf32>
    %270 = arith.select %262, %251, %227 : vector<2x64xi1>, vector<2x64xf32>
    %c6_i32 = arith.constant 6 : i32
    %271 = arith.index_cast %c6_i32 : i32 to index
    %c0_67 = arith.constant 0 : index
    %c0_68 = arith.constant 0 : index
    %272 = vector.load %arg1[%271, %c0_67, %c0_68] : memref<8x2x256xf32, #tpu.memory_space<vmem>>, vector<1x2x256xf32>
    %273 = vector.shape_cast %272 : vector<1x2x256xf32> to vector<2x256xf32>
    %cst_69 = arith.constant dense<0.000000e+00> : vector<2x256xf32>
    %274 = tpu.matmul %269, %3, %cst_69 {dimension_numbers = #tpu.dot_dimension_numbers<[1], [0], [0], [1], [0, 0, 1, 1], [], []>} : vector<2x64xf32>, vector<64x256xf32>, vector<2x256xf32> -> vector<2x256xf32>
    %275 = arith.addf %273, %274 : vector<2x256xf32>
    %276 = vector.extract_strided_slice %275 {offsets = [0, 0], sizes = [2, 128], strides = [1, 1]} : vector<2x256xf32> to vector<2x128xf32>
    %277 = arith.negf %276 : vector<2x128xf32>
    %278 = math.exp %277 : vector<2x128xf32>
    %cst_70 = arith.constant 1.000000e+00 : f32
    %279 = vector.broadcast %cst_70 : f32 to vector<2x128xf32>
    %280 = arith.addf %279, %278 : vector<2x128xf32>
    %281 = arith.divf %279, %280 : vector<2x128xf32>
    %282 = vector.extract_strided_slice %281 {offsets = [0, 0], sizes = [2, 64], strides = [1, 1]} : vector<2x128xf32> to vector<2x64xf32>
    %283 = vector.extract_strided_slice %281 {offsets = [0, 64], sizes = [2, 64], strides = [1, 1]} : vector<2x128xf32> to vector<2x64xf32>
    %284 = vector.extract_strided_slice %275 {offsets = [0, 128], sizes = [2, 64], strides = [1, 1]} : vector<2x256xf32> to vector<2x64xf32>
    %285 = math.tanh %284 : vector<2x64xf32>
    %286 = vector.extract_strided_slice %275 {offsets = [0, 192], sizes = [2, 64], strides = [1, 1]} : vector<2x256xf32> to vector<2x64xf32>
    %287 = arith.negf %286 : vector<2x64xf32>
    %288 = math.exp %287 : vector<2x64xf32>
    %cst_71 = arith.constant 1.000000e+00 : f32
    %289 = vector.broadcast %cst_71 : f32 to vector<2x64xf32>
    %290 = arith.addf %289, %288 : vector<2x64xf32>
    %291 = arith.divf %289, %290 : vector<2x64xf32>
    %292 = arith.mulf %283, %270 : vector<2x64xf32>
    %293 = arith.mulf %282, %285 : vector<2x64xf32>
    %294 = arith.addf %292, %293 : vector<2x64xf32>
    %295 = math.tanh %294 : vector<2x64xf32>
    %296 = arith.mulf %291, %295 : vector<2x64xf32>
    %297 = arith.addi %10, %c6_i32 : i32
    %c7_i32_72 = arith.constant 7 : i32
    %298 = arith.subi %c7_i32_72, %297 : i32
    %299 = vector.broadcast %297 : i32 to vector<2x64xi32>
    %300 = vector.broadcast %298 : i32 to vector<2x64xi32>
    %301 = arith.select %9, %299, %300 : vector<2x64xi1>, vector<2x64xi32>
    %c0_i32_73 = arith.constant 0 : i32
    %302 = vector.broadcast %c0_i32_73 : i32 to vector<2x64xi32>
    %303 = arith.cmpi sge, %301, %302 : vector<2x64xi32>
    %304 = arith.cmpi slt, %301, %6 : vector<2x64xi32>
    %305 = arith.andi %303, %304 : vector<2x64xi1>
    %cst_74 = arith.constant 0.000000e+00 : f32
    %306 = vector.broadcast %cst_74 : f32 to vector<2x64xf32>
    %307 = arith.select %305, %296, %306 : vector<2x64xi1>, vector<2x64xf32>
    %308 = arith.index_cast %c6_i32 : i32 to index
    %c0_75 = arith.constant 0 : index
    %c0_76 = arith.constant 0 : index
    %309 = vector.load %arg4[%308, %c0_75, %c0_76] : memref<8x2x64xf32, #tpu.memory_space<vmem>>, vector<1x2x64xf32>
    %310 = vector.shape_cast %309 : vector<1x2x64xf32> to vector<2x64xf32>
    %311 = vector.shape_cast %307 : vector<2x64xf32> to vector<1x2x64xf32>
    tpu.vector_store %arg4[%308, %c0_75, %c0_76], %311 {strides = array<i32>} : memref<8x2x64xf32, #tpu.memory_space<vmem>>, vector<1x2x64xf32>,
    %312 = arith.select %305, %296, %269 : vector<2x64xi1>, vector<2x64xf32>
    %313 = arith.select %305, %294, %270 : vector<2x64xi1>, vector<2x64xf32>
    %c7_i32_77 = arith.constant 7 : i32
    %314 = arith.index_cast %c7_i32_77 : i32 to index
    %c0_78 = arith.constant 0 : index
    %c0_79 = arith.constant 0 : index
    %315 = vector.load %arg1[%314, %c0_78, %c0_79] : memref<8x2x256xf32, #tpu.memory_space<vmem>>, vector<1x2x256xf32>
    %316 = vector.shape_cast %315 : vector<1x2x256xf32> to vector<2x256xf32>
    %cst_80 = arith.constant dense<0.000000e+00> : vector<2x256xf32>
    %317 = tpu.matmul %312, %3, %cst_80 {dimension_numbers = #tpu.dot_dimension_numbers<[1], [0], [0], [1], [0, 0, 1, 1], [], []>} : vector<2x64xf32>, vector<64x256xf32>, vector<2x256xf32> -> vector<2x256xf32>
    %318 = arith.addf %316, %317 : vector<2x256xf32>
    %319 = vector.extract_strided_slice %318 {offsets = [0, 0], sizes = [2, 128], strides = [1, 1]} : vector<2x256xf32> to vector<2x128xf32>
    %320 = arith.negf %319 : vector<2x128xf32>
    %321 = math.exp %320 : vector<2x128xf32>
    %cst_81 = arith.constant 1.000000e+00 : f32
    %322 = vector.broadcast %cst_81 : f32 to vector<2x128xf32>
    %323 = arith.addf %322, %321 : vector<2x128xf32>
    %324 = arith.divf %322, %323 : vector<2x128xf32>
    %325 = vector.extract_strided_slice %324 {offsets = [0, 0], sizes = [2, 64], strides = [1, 1]} : vector<2x128xf32> to vector<2x64xf32>
    %326 = vector.extract_strided_slice %324 {offsets = [0, 64], sizes = [2, 64], strides = [1, 1]} : vector<2x128xf32> to vector<2x64xf32>
    %327 = vector.extract_strided_slice %318 {offsets = [0, 128], sizes = [2, 64], strides = [1, 1]} : vector<2x256xf32> to vector<2x64xf32>
    %328 = math.tanh %327 : vector<2x64xf32>
    %329 = vector.extract_strided_slice %318 {offsets = [0, 192], sizes = [2, 64], strides = [1, 1]} : vector<2x256xf32> to vector<2x64xf32>
    %330 = arith.negf %329 : vector<2x64xf32>
    %331 = math.exp %330 : vector<2x64xf32>
    %cst_82 = arith.constant 1.000000e+00 : f32
    %332 = vector.broadcast %cst_82 : f32 to vector<2x64xf32>
    %333 = arith.addf %332, %331 : vector<2x64xf32>
    %334 = arith.divf %332, %333 : vector<2x64xf32>
    %335 = arith.mulf %326, %313 : vector<2x64xf32>
    %336 = arith.mulf %325, %328 : vector<2x64xf32>
    %337 = arith.addf %335, %336 : vector<2x64xf32>
    %338 = math.tanh %337 : vector<2x64xf32>
    %339 = arith.mulf %334, %338 : vector<2x64xf32>
    %340 = arith.addi %10, %c7_i32_77 : i32
    %c7_i32_83 = arith.constant 7 : i32
    %341 = arith.subi %c7_i32_83, %340 : i32
    %342 = vector.broadcast %340 : i32 to vector<2x64xi32>
    %343 = vector.broadcast %341 : i32 to vector<2x64xi32>
    %344 = arith.select %9, %342, %343 : vector<2x64xi1>, vector<2x64xi32>
    %c0_i32_84 = arith.constant 0 : i32
    %345 = vector.broadcast %c0_i32_84 : i32 to vector<2x64xi32>
    %346 = arith.cmpi sge, %344, %345 : vector<2x64xi32>
    %347 = arith.cmpi slt, %344, %6 : vector<2x64xi32>
    %348 = arith.andi %346, %347 : vector<2x64xi1>
    %cst_85 = arith.constant 0.000000e+00 : f32
    %349 = vector.broadcast %cst_85 : f32 to vector<2x64xf32>
    %350 = arith.select %348, %339, %349 : vector<2x64xi1>, vector<2x64xf32>
    %351 = arith.index_cast %c7_i32_77 : i32 to index
    %c0_86 = arith.constant 0 : index
    %c0_87 = arith.constant 0 : index
    %352 = vector.load %arg4[%351, %c0_86, %c0_87] : memref<8x2x64xf32, #tpu.memory_space<vmem>>, vector<1x2x64xf32>
    %353 = vector.shape_cast %352 : vector<1x2x64xf32> to vector<2x64xf32>
    %354 = vector.shape_cast %350 : vector<2x64xf32> to vector<1x2x64xf32>
    tpu.vector_store %arg4[%351, %c0_86, %c0_87], %354 {strides = array<i32>} : memref<8x2x64xf32, #tpu.memory_space<vmem>>, vector<1x2x64xf32>,
    %355 = arith.select %348, %339, %312 : vector<2x64xi1>, vector<2x64xf32>
    %356 = arith.select %348, %337, %313 : vector<2x64xi1>, vector<2x64xf32>
    %c8_i32_88 = arith.constant 8 : i32
    %c0_89 = arith.constant 0 : index
    %c0_90 = arith.constant 0 : index
    %357 = vector.load %arg5[%c0_89, %c0_90] : memref<2x64xf32, #tpu.memory_space<vmem>>, vector<2x64xf32>
    tpu.vector_store %arg5[%c0_89, %c0_90], %355 {strides = array<i32>} : memref<2x64xf32, #tpu.memory_space<vmem>>, vector<2x64xf32>,
    %c0_91 = arith.constant 0 : index
    %c0_92 = arith.constant 0 : index
    %358 = vector.load %arg6[%c0_91, %c0_92] : memref<2x64xf32, #tpu.memory_space<vmem>>, vector<2x64xf32>
    tpu.vector_store %arg6[%c0_91, %c0_92], %356 {strides = array<i32>} : memref<2x64xf32, #tpu.memory_space<vmem>>, vector<2x64xf32>,
    return
  }
  func.func @transform_0(%arg0: i32) -> (i32, i32, i32) {
    %c0_i32 = arith.constant 0 : i32
    %c0_i32_0 = arith.constant 0 : i32
    %c0_i32_1 = arith.constant 0 : i32
    return %arg0, %c0_i32, %c0_i32_0 : i32, i32, i32
  }
  func.func @transform_1(%arg0: i32) -> (i32, i32) {
    %c0_i32 = arith.constant 0 : i32
    %c0_i32_0 = arith.constant 0 : i32
    %c0_i32_1 = arith.constant 0 : i32
    return %c0_i32, %c0_i32_0 : i32, i32
  }
  func.func @transform_2(%arg0: i32) -> (i32, i32) {
    %c0_i32 = arith.constant 0 : i32
    %c0_i32_0 = arith.constant 0 : i32
    %c0_i32_1 = arith.constant 0 : i32
    return %c0_i32, %c0_i32_0 : i32, i32
  }
  func.func @transform_3(%arg0: i32) -> (i32, i32, i32) {
    %c0_i32 = arith.constant 0 : i32
    %c0_i32_0 = arith.constant 0 : i32
    %c0_i32_1 = arith.constant 0 : i32
    return %arg0, %c0_i32, %c0_i32_0 : i32, i32, i32
  }
}

</mosaic_0001>

<llo_original>
// kernel: tpu_custom_call.1
$region0: #{tpu_custom_call.1}
  #allocation0 [shape = 'u32[]', space=smem, size = 0x4, offset = 0x4, fixed_abs, tag = 'smem constant byte address 0x4 - core index']
  #allocation1 [shape = 'u32[144,128]{1,0:T(1,128)}', space=vmem, size = 0x12000, scoped, tag = 'internal scratch']
  #allocation2 [shape = 'f32[2,64]{1,0:T(2,128)}', space=vmem, size = 0x400, scoped, tag = 'scratch operand']
  #allocation3 [shape = 'f32[2,64]{1,0:T(2,128)}', space=vmem, size = 0x400, scoped, tag = 'scratch operand']
  %s0 = inlined_call_operand.hbm [shape: f32[8,2,256], index: 0, kind: input, shape index: {}]
  %s1 = inlined_call_operand.vmem [shape: s32[2,1], index: 1, kind: input, shape index: {}]
  %s2 = inlined_call_operand.hbm [shape: f32[64,256], index: 2, kind: input, shape index: {}]
  %s3 = inlined_call_operand.hbm [shape: f32[8,2,64], index: 3, kind: output, shape index: {}]
  %s4 = sld [smem:[#allocation0]]
  $region34: #{tpu_custom_call.1} parent=0
    _
  %s6 = ssub.s32 1, %s4
  %s7 = scalar_select 0, %s6, %s4
  $region1: #{tpu_custom_call.1} parent=0
    #allocation4 [shape = 'u8[16384]{0}', space=vmem, size = 0x4000, scoped, tag = 'input window, operand 0, single buffered']
    #allocation5 [shape = 's32[1]{0}', space=sflag, size = 0x4, scoped, tag = 'scoped memory for tpu_custom_call.1']
    #allocation6 [shape = 's32[1]{0}', space=sflag, size = 0x4, scoped, tag = 'scoped memory for tpu_custom_call.1']
    #allocation7 [shape = 'u8[65536]{0}', space=vmem, size = 0x10000, scoped, tag = 'input window, operand 2, single buffered']
    #allocation8 [shape = 's32[1]{0}', space=sflag, size = 0x4, scoped, tag = 'scoped memory for tpu_custom_call.1']
    #allocation9 [shape = 'u8[8192]{0}', space=vmem, size = 0x2000, scoped, tag = 'output window, operand 0, single buffered']
    %8 = vsyncpa [#allocation5], 0
    %9 = vsyncpa [#allocation8], 0
    %10 = vsyncpa [#allocation6], 0
    // Predicated region
    $region2: #{tpu_custom_call.1} parent=1 // pred_check
      _
    $region3: #{tpu_custom_call.1} parent=1 // pred_check_branch
      %12 = sbr.rel (0) target = $region5
    $region4: #{tpu_custom_call.1} parent=1 // pred_region
      %s14 = ssub.s32 512, 512
      %15 = vsyncadd [#allocation5], %s14
      %s16 = sshll.u32 [#allocation4], 4
      %s17 = int_to_ptr.vmem [resolvable:$true] %s16
      %22 = dma.hbm_to_vmem [thread:$0]  %s0, 512, %s17, [#allocation5], 64, 64, 4
    $region5: #{tpu_custom_call.1} parent=1 // pred_fallthru
      _
    // Predicated region
    $region6: #{tpu_custom_call.1} parent=1 // pred_check
      _
    $region7: #{tpu_custom_call.1} parent=1 // pred_check_branch
      %24 = sbr.rel (0) target = $region9
    $region8: #{tpu_custom_call.1} parent=1 // pred_region
      _
    $region9: #{tpu_custom_call.1} parent=1 // pred_fallthru
      _
    // Predicated region
    $region10: #{tpu_custom_call.1} parent=1 // pred_check
      _
    $region11: #{tpu_custom_call.1} parent=1 // pred_check_branch
      %26 = sbr.rel (0) target = $region13
    $region12: #{tpu_custom_call.1} parent=1 // pred_region
      %s28 = ssub.s32 2048, 2048
      %29 = vsyncadd [#allocation8], %s28
      %s30 = sshll.u32 [#allocation7], 4
      %s31 = int_to_ptr.vmem [resolvable:$true] %s30
      %36 = dma.hbm_to_vmem [thread:$0]  %s2, 2048, %s31, [#allocation8], 256, 256, 16
    $region13: #{tpu_custom_call.1} parent=1 // pred_fallthru
      _
    // Predicated region
    $region14: #{tpu_custom_call.1} parent=1 // pred_check
      _
    $region15: #{tpu_custom_call.1} parent=1 // pred_check_branch
      %38 = sbr.rel (0) target = $region17
    $region16: #{tpu_custom_call.1} parent=1 // pred_region
      %39 = dma.done [#allocation5], 512
    $region17: #{tpu_custom_call.1} parent=1 // pred_fallthru
      _
    // Predicated region
    $region18: #{tpu_custom_call.1} parent=1 // pred_check
      _
    $region19: #{tpu_custom_call.1} parent=1 // pred_check_branch
      %41 = sbr.rel (0) target = $region21
    $region20: #{tpu_custom_call.1} parent=1 // pred_region
      %42 = dma.done [#allocation8], 2048
    $region21: #{tpu_custom_call.1} parent=1 // pred_fallthru
      _
    %p43 = scmp.eq.s32.totalorder 0, 0
    // Predicated region
    $region22: #{tpu_custom_call.1} parent=1 // pred_check
      %p44 = pneg %p43
    $region23: #{tpu_custom_call.1} parent=1 // pred_check_branch
      %46 = sbr.rel (%p44) target = $region25
    $region24: #{tpu_custom_call.1} parent=1 // pred_region
      %vm47 = vcmask 517120
      %48 = vst.msk [vmem:[#allocation2] sm:$0x3] %vm47, 0.0
      %49 = vst.msk [vmem:[#allocation3] sm:$0x3] %vm47, 0.0
    $region25: #{tpu_custom_call.1} parent=1 // pred_fallthru
      _
    %v50 = vld [vmem:[#allocation7] sm:$0xff]
    %v51 = vld [vmem:[#allocation7 + $0x8] sm:$0xff]
    %v52 = vld [vmem:[#allocation7 + $0x10] sm:$0xff]
    %v53 = vld [vmem:[#allocation7 + $0x18] sm:$0xff]
    %v54 = vld [vmem:[#allocation7 + $0x20] sm:$0xff]
    %v55 = vld [vmem:[#allocation7 + $0x28] sm:$0xff]
    %v56 = vld [vmem:[#allocation7 + $0x30] sm:$0xff]
    %v57 = vld [vmem:[#allocation7 + $0x38] sm:$0xff]
    %v58 = vld [vmem:[#allocation7 + $0x40] sm:$0xff]
    %v59 = vld [vmem:[#allocation7 + $0x48] sm:$0xff]
    %v60 = vld [vmem:[#allocation7 + $0x50] sm:$0xff]
    %v61 = vld [vmem:[#allocation7 + $0x58] sm:$0xff]
    %v62 = vld [vmem:[#allocation7 + $0x60] sm:$0xff]
    %v63 = vld [vmem:[#allocation7 + $0x68] sm:$0xff]
    %v64 = vld [vmem:[#allocation7 + $0x70] sm:$0xff]
    %v65 = vld [vmem:[#allocation7 + $0x78] sm:$0xff]
    %v66 = vld [vmem:[%s1] sm:$0x3]
    %67 = vset.pattern.permute.xlu0 0
    %68 = vperm.xlu0 %67, %v66
    %v69 = vpop.permute.xlu0 %68
    %v70 = vlaneseq
    %v71 = vand.u32 %v70, 127
    %vm72 = vcmp.lt.s32.totalorder %v71, 32
    %s73 = smul.u32 0, 8
    %v74 = vld [vmem:[#allocation2] sm:$0x3]
    %v75 = vld [vmem:[#allocation3] sm:$0x3]
    %v76 = vld [vmem:[#allocation4] sm:$0xf]
    %vm77 = vcmask 523264
    %v79 = vsel %vm77, %v74, 0
    %81 = vmatprep.subr.mxu0 %v51
    %82 = vmatpush1.msra.mxu0 %v50
    %83 = vmatprep.subr.mxu0 %v53
    %84 = vmatpush1.msra.mxu0 %v52
    %85 = vmatprep.subr.mxu0 %v55
    %86 = vmatpush1.msra.mxu0 %v54
    %87 = vmatprep.subr.mxu0 %v57
    %88 = vmatpush1.msra.mxu0 %v56
    %89 = vmatprep.subr.mxu0 %v59
    %90 = vmatpush1.msra.mxu0 %v58
    %91 = vmatprep.subr.mxu0 %v61
    %92 = vmatpush1.msra.mxu0 %v60
    %93 = vmatprep.subr.mxu0 %v63
    %94 = vmatpush1.msra.mxu0 %v62
    %95 = vmatprep.subr.mxu0 %v65
    %96 = vmatpush1.msra.mxu0 %v64
    %97 = vmatprep.subr.mxu0 0.0
    %98 = vmatpush1.msra.mxu0 0.0
    %99 = vmatprep.subr.mxu0 0.0
    %100 = vmatpush1.msra.mxu0 0.0
    %101 = vmatprep.subr.mxu0 0.0
    %102 = vmatpush1.msra.mxu0 0.0
    %103 = vmatprep.subr.mxu0 0.0
    %104 = vmatpush1.msra.mxu0 0.0
    %105 = vmatprep.subr.mxu0 0.0
    %106 = vmatpush1.msra.mxu0 0.0
    %107 = vmatprep.subr.mxu0 0.0
    %108 = vmatpush1.msra.mxu0 0.0
    %109 = vmatprep.subr.mxu0 0.0
    %110 = vmatpush1.msra.mxu0 0.0
    %111 = vmatprep.subr.mxu0 0.0
    %112 = vmatpush1.msra.mxu0 0.0
    %113 = vmatprep.subr.mxu0 0.0
    %114 = vmatpush1.msra.mxu0 0.0
    %115 = vmatprep.subr.mxu0 0.0
    %116 = vmatpush1.msra.mxu0 0.0
    %117 = vmatprep.subr.mxu0 0.0
    %118 = vmatpush1.msra.mxu0 0.0
    %119 = vmatprep.subr.mxu0 0.0
    %120 = vmatpush1.msra.mxu0 0.0
    %121 = vmatprep.subr.mxu0 0.0
    %122 = vmatpush1.msra.mxu0 0.0
    %123 = vmatprep.subr.mxu0 0.0
    %124 = vmatpush1.msra.mxu0 0.0
    %125 = vmatprep.subr.mxu0 0.0
    %126 = vmatpush1.msra.mxu0 0.0
    %127 = vmatprep.subr.mxu0 0.0
    %128 = vmatpush1.msra.mxu0 0.0
    %129 = vmatprep.subr.mxu0 0.0
    %130 = vmatpush1.msra.mxu0 0.0
    %131 = vmatprep.subr.mxu0 0.0
    %132 = vmatpush1.msra.mxu0 0.0
    %133 = vmatprep.subr.mxu0 0.0
    %134 = vmatpush1.msra.mxu0 0.0
    %135 = vmatprep.subr.mxu0 0.0
    %136 = vmatpush1.msra.mxu0 0.0
    %137 = vmatprep.subr.mxu0 0.0
    %138 = vmatpush1.msra.mxu0 0.0
    %139 = vmatprep.subr.mxu0 0.0
    %140 = vmatpush1.msra.mxu0 0.0
    %141 = vmatprep.subr.mxu0 0.0
    %142 = vmatpush1.msra.mxu0 0.0
    %143 = vmatprep.subr.mxu0 0.0
    %144 = vmatpush1.msra.mxu0 0.0
    %145 = vmatprep.mubr.f32.mxu0 0.0
    %146 = vmatmul.mubr.f32.gmra.mrb[0].mxu0 %v79
    %v147 = vpop.f32.mrb[0].mxu0
    %v148 = vadd.f32 0.0, %v147
    %v149 = vpop.f32.mrb[0].mxu0
    %v150 = vadd.f32 0.0, %v149
    %151 = vdwg.mxu0
    %v154 = vcombine.low %v148, %v150
    %v156 = vunpack.c.l.s4 1983009808
    %v157 = vunpack.c.0.s8 %v156
    %v158 = vlaneseq
    %v159 = vshrl.u32 %v158, 7
    %v160 = vsub.s32 %v157, %v159
    %v161 = vrot.slane %v154, %v160
    %v163 = vadd.f32 %v76, %v161
    %v164 = vxor.u32 %v163, 2147483648
    %v165 = vmul.f32 %v164, 1.442695
    %v166 = vpow.pop %v165
    %v167 = vadd.f32 %v166, 1.0
    %v168 = vrcp.pop %v167
    %v169 = vmul.f32 1.0, %v168
    %v171 = vrot.slane %v163, 2
    %v173 = vtanh.pop %v171
    %174 = vrot.lane.b32.xlu0 %v163, 64
    %v175 = vpop.permute.xlu0 %174
    %v176 = vrot.slane %v175, 2
    %v178 = vxor.u32 %v176, 2147483648
    %v179 = vmul.f32 %v178, 1.442695
    %v180 = vpow.pop %v179
    %v181 = vadd.f32 %v180, 1.0
    %v182 = vrcp.pop %v181
    %v183 = vmul.f32 1.0, %v182
    %v186 = vunpack.c.l.s4 1983009808
    %v187 = vunpack.c.0.s8 %v186
    %v188 = vlaneseq
    %v189 = vshrl.u32 %v188, 7
    %v190 = vsub.s32 %v187, %v189
    %v191 = vrot.slane %v75, %v190
    %192 = vrot.lane.b32.xlu0 %v191, 64
    %v193 = vpop.permute.xlu0 %192
    %v195 = vmul.f32 %v169, %v193
    %v196 = vmul.f32 %v169, %v173
    %198 = vrot.lane.b32.xlu0 %v196, 64
    %v199 = vpop.permute.xlu0 %198
    %v201 = vadd.f32 %v195, %v199
    %v202 = vtanh.pop %v201
    %204 = vrot.lane.b32.xlu0 %v202, 64
    %v205 = vpop.permute.xlu0 %204
    %v207 = vmul.f32 %v183, %v205
    %s208 = ssub.s32 7, %s73
    %v209 = vstv %s73
    %v210 = vstv %s208
    %v211 = vsel %vm72, %v209, %v210
    %vm212 = vcmp.ge.s32.totalorder %v211, 0
    %vm213 = vcmp.lt.s32.totalorder %v211, %v69
    %vm214 = vmand %vm212, %vm213
    %v215 = vsel %vm214, %v207, 0.0
    %vm216 = vcmask 517120
    %217 = vst.msk [vmem:[#allocation9] sm:$0x3] %vm216, %v215
    %v218 = vsel %vm214, %v207, %v74
    %v221 = vunpack.c.l.s4 1983009808
    %v222 = vunpack.c.0.s8 %v221
    %v223 = vlaneseq
    %v224 = vshrl.u32 %v223, 7
    %v225 = vsub.s32 %v222, %v224
    %v226 = vrot.slane %v201, %v225
    %227 = vrot.lane.b32.xlu0 %v226, 64
    %v228 = vpop.permute.xlu0 %227
    %v230 = vsel %vm214, %v228, %v75
    %s231 = scalar_lea.vmem [#allocation4], 4
    %v232 = vld [vmem:[%s231] sm:$0xf]
    %v234 = vsel %vm77, %v218, 0
    %236 = vmatprep.subr.mxu0 %v51
    %237 = vmatpush1.msra.mxu0 %v50
    %238 = vmatprep.subr.mxu0 %v53
    %239 = vmatpush1.msra.mxu0 %v52
    %240 = vmatprep.subr.mxu0 %v55
    %241 = vmatpush1.msra.mxu0 %v54
    %242 = vmatprep.subr.mxu0 %v57
    %243 = vmatpush1.msra.mxu0 %v56
    %244 = vmatprep.subr.mxu0 %v59
    %245 = vmatpush1.msra.mxu0 %v58
    %246 = vmatprep.subr.mxu0 %v61
    %247 = vmatpush1.msra.mxu0 %v60
    %248 = vmatprep.subr.mxu0 %v63
    %249 = vmatpush1.msra.mxu0 %v62
    %250 = vmatprep.subr.mxu0 %v65
    %251 = vmatpush1.msra.mxu0 %v64
    %252 = vmatprep.subr.mxu0 0.0
    %253 = vmatpush1.msra.mxu0 0.0
    %254 = vmatprep.subr.mxu0 0.0
    %255 = vmatpush1.msra.mxu0 0.0
    %256 = vmatprep.subr.mxu0 0.0
    %257 = vmatpush1.msra.mxu0 0.0
    %258 = vmatprep.subr.mxu0 0.0
    %259 = vmatpush1.msra.mxu0 0.0
    %260 = vmatprep.subr.mxu0 0.0
    %261 = vmatpush1.msra.mxu0 0.0
    %262 = vmatprep.subr.mxu0 0.0
    %263 = vmatpush1.msra.mxu0 0.0
    %264 = vmatprep.subr.mxu0 0.0
    %265 = vmatpush1.msra.mxu0 0.0
    %266 = vmatprep.subr.mxu0 0.0
    %267 = vmatpush1.msra.mxu0 0.0
    %268 = vmatprep.subr.mxu0 0.0
    %269 = vmatpush1.msra.mxu0 0.0
    %270 = vmatprep.subr.mxu0 0.0
    %271 = vmatpush1.msra.mxu0 0.0
    %272 = vmatprep.subr.mxu0 0.0
    %273 = vmatpush1.msra.mxu0 0.0
    %274 = vmatprep.subr.mxu0 0.0
    %275 = vmatpush1.msra.mxu0 0.0
    %276 = vmatprep.subr.mxu0 0.0
    %277 = vmatpush1.msra.mxu0 0.0
    %278 = vmatprep.subr.mxu0 0.0
    %279 = vmatpush1.msra.mxu0 0.0
    %280 = vmatprep.subr.mxu0 0.0
    %281 = vmatpush1.msra.mxu0 0.0
    %282 = vmatprep.subr.mxu0 0.0
    %283 = vmatpush1.msra.mxu0 0.0
    %284 = vmatprep.subr.mxu0 0.0
    %285 = vmatpush1.msra.mxu0 0.0
    %286 = vmatprep.subr.mxu0 0.0
    %287 = vmatpush1.msra.mxu0 0.0
    %288 = vmatprep.subr.mxu0 0.0
    %289 = vmatpush1.msra.mxu0 0.0
    %290 = vmatprep.subr.mxu0 0.0
    %291 = vmatpush1.msra.mxu0 0.0
    %292 = vmatprep.subr.mxu0 0.0
    %293 = vmatpush1.msra.mxu0 0.0
    %294 = vmatprep.subr.mxu0 0.0
    %295 = vmatpush1.msra.mxu0 0.0
    %296 = vmatprep.subr.mxu0 0.0
    %297 = vmatpush1.msra.mxu0 0.0
    %298 = vmatprep.subr.mxu0 0.0
    %299 = vmatpush1.msra.mxu0 0.0
    %300 = vmatprep.mubr.f32.mxu0 0.0
    %301 = vmatmul.mubr.f32.gmra.mrb[0].mxu0 %v234
    %v302 = vpop.f32.mrb[0].mxu0
    %v303 = vadd.f32 0.0, %v302
    %v304 = vpop.f32.mrb[0].mxu0
    %v305 = vadd.f32 0.0, %v304
    %306 = vdwg.mxu0
    %v309 = vcombine.low %v303, %v305
    %v311 = vunpack.c.l.s4 1983009808
    %v312 = vunpack.c.0.s8 %v311
    %v313 = vlaneseq
    %v314 = vshrl.u32 %v313, 7
    %v315 = vsub.s32 %v312, %v314
    %v316 = vrot.slane %v309, %v315
    %v318 = vadd.f32 %v232, %v316
    %v319 = vxor.u32 %v318, 2147483648
    %v320 = vmul.f32 %v319, 1.442695
    %v321 = vpow.pop %v320
    %v322 = vadd.f32 %v321, 1.0
    %v323 = vrcp.pop %v322
    %v324 = vmul.f32 1.0, %v323
    %v326 = vrot.slane %v318, 2
    %v328 = vtanh.pop %v326
    %329 = vrot.lane.b32.xlu0 %v318, 64
    %v330 = vpop.permute.xlu0 %329
    %v331 = vrot.slane %v330, 2
    %v333 = vxor.u32 %v331, 2147483648
    %v334 = vmul.f32 %v333, 1.442695
    %v335 = vpow.pop %v334
    %v336 = vadd.f32 %v335, 1.0
    %v337 = vrcp.pop %v336
    %v338 = vmul.f32 1.0, %v337
    %v341 = vunpack.c.l.s4 1983009808
    %v342 = vunpack.c.0.s8 %v341
    %v343 = vlaneseq
    %v344 = vshrl.u32 %v343, 7
    %v345 = vsub.s32 %v342, %v344
    %v346 = vrot.slane %v230, %v345
    %347 = vrot.lane.b32.xlu0 %v346, 64
    %v348 = vpop.permute.xlu0 %347
    %v350 = vmul.f32 %v324, %v348
    %v351 = vmul.f32 %v324, %v328
    %353 = vrot.lane.b32.xlu0 %v351, 64
    %v354 = vpop.permute.xlu0 %353
    %v356 = vadd.f32 %v350, %v354
    %v357 = vtanh.pop %v356
    %359 = vrot.lane.b32.xlu0 %v357, 64
    %v360 = vpop.permute.xlu0 %359
    %v362 = vmul.f32 %v338, %v360
    %s363 = sadd.s32 %s73, 1
    %s364 = ssub.s32 6, %s73
    %v365 = vstv %s363
    %v366 = vstv %s364
    %v367 = vsel %vm72, %v365, %v366
    %vm368 = vcmp.ge.s32.totalorder %v367, 0
    %vm369 = vcmp.lt.s32.totalorder %v367, %v69
    %vm370 = vmand %vm368, %vm369
    %v371 = vsel %vm370, %v362, 0.0
    %s372 = scalar_lea.vmem [#allocation9], 2
    %373 = vst.msk [vmem:[%s372] sm:$0x3] %vm216, %v371
    %v374 = vsel %vm370, %v362, %v218
    %v377 = vunpack.c.l.s4 1983009808
    %v378 = vunpack.c.0.s8 %v377
    %v379 = vlaneseq
    %v380 = vshrl.u32 %v379, 7
    %v381 = vsub.s32 %v378, %v380
    %v382 = vrot.slane %v356, %v381
    %383 = vrot.lane.b32.xlu0 %v382, 64
    %v384 = vpop.permute.xlu0 %383
    %v386 = vsel %vm370, %v384, %v230
    %s387 = scalar_lea.vmem [#allocation4], 8
    %v388 = vld [vmem:[%s387] sm:$0xf]
    %v390 = vsel %vm77, %v374, 0
    %392 = vmatprep.subr.mxu0 %v51
    %393 = vmatpush1.msra.mxu0 %v50
    %394 = vmatprep.subr.mxu0 %v53
    %395 = vmatpush1.msra.mxu0 %v52
    %396 = vmatprep.subr.mxu0 %v55
    %397 = vmatpush1.msra.mxu0 %v54
    %398 = vmatprep.subr.mxu0 %v57
    %399 = vmatpush1.msra.mxu0 %v56
    %400 = vmatprep.subr.mxu0 %v59
    %401 = vmatpush1.msra.mxu0 %v58
    %402 = vmatprep.subr.mxu0 %v61
    %403 = vmatpush1.msra.mxu0 %v60
    %404 = vmatprep.subr.mxu0 %v63
    %405 = vmatpush1.msra.mxu0 %v62
    %406 = vmatprep.subr.mxu0 %v65
    %407 = vmatpush1.msra.mxu0 %v64
    %408 = vmatprep.subr.mxu0 0.0
    %409 = vmatpush1.msra.mxu0 0.0
    %410 = vmatprep.subr.mxu0 0.0
    %411 = vmatpush1.msra.mxu0 0.0
    %412 = vmatprep.subr.mxu0 0.0
    %413 = vmatpush1.msra.mxu0 0.0
    %414 = vmatprep.subr.mxu0 0.0
    %415 = vmatpush1.msra.mxu0 0.0
    %416 = vmatprep.subr.mxu0 0.0
    %417 = vmatpush1.msra.mxu0 0.0
    %418 = vmatprep.subr.mxu0 0.0
    %419 = vmatpush1.msra.mxu0 0.0
    %420 = vmatprep.subr.mxu0 0.0
    %421 = vmatpush1.msra.mxu0 0.0
    %422 = vmatprep.subr.mxu0 0.0
    %423 = vmatpush1.msra.mxu0 0.0
    %424 = vmatprep.subr.mxu0 0.0
    %425 = vmatpush1.msra.mxu0 0.0
    %426 = vmatprep.subr.mxu0 0.0
    %427 = vmatpush1.msra.mxu0 0.0
    %428 = vmatprep.subr.mxu0 0.0
    %429 = vmatpush1.msra.mxu0 0.0
    %430 = vmatprep.subr.mxu0 0.0
    %431 = vmatpush1.msra.mxu0 0.0
    %432 = vmatprep.subr.mxu0 0.0
    %433 = vmatpush1.msra.mxu0 0.0
    %434 = vmatprep.subr.mxu0 0.0
    %435 = vmatpush1.msra.mxu0 0.0
    %436 = vmatprep.subr.mxu0 0.0
    %437 = vmatpush1.msra.mxu0 0.0
    %438 = vmatprep.subr.mxu0 0.0
    %439 = vmatpush1.msra.mxu0 0.0
    %440 = vmatprep.subr.mxu0 0.0
    %441 = vmatpush1.msra.mxu0 0.0
    %442 = vmatprep.subr.mxu0 0.0
    %443 = vmatpush1.msra.mxu0 0.0
    %444 = vmatprep.subr.mxu0 0.0
    %445 = vmatpush1.msra.mxu0 0.0
    %446 = vmatprep.subr.mxu0 0.0
    %447 = vmatpush1.msra.mxu0 0.0
    %448 = vmatprep.subr.mxu0 0.0
    %449 = vmatpush1.msra.mxu0 0.0
    %450 = vmatprep.subr.mxu0 0.0
    %451 = vmatpush1.msra.mxu0 0.0
    %452 = vmatprep.subr.mxu0 0.0
    %453 = vmatpush1.msra.mxu0 0.0
    %454 = vmatprep.subr.mxu0 0.0
    %455 = vmatpush1.msra.mxu0 0.0
    %456 = vmatprep.mubr.f32.mxu0 0.0
    %457 = vmatmul.mubr.f32.gmra.mrb[0].mxu0 %v390
    %v458 = vpop.f32.mrb[0].mxu0
    %v459 = vadd.f32 0.0, %v458
    %v460 = vpop.f32.mrb[0].mxu0
    %v461 = vadd.f32 0.0, %v460
    %462 = vdwg.mxu0
    %v465 = vcombine.low %v459, %v461
    %v467 = vunpack.c.l.s4 1983009808
    %v468 = vunpack.c.0.s8 %v467
    %v469 = vlaneseq
    %v470 = vshrl.u32 %v469, 7
    %v471 = vsub.s32 %v468, %v470
    %v472 = vrot.slane %v465, %v471
    %v474 = vadd.f32 %v388, %v472
    %v475 = vxor.u32 %v474, 2147483648
    %v476 = vmul.f32 %v475, 1.442695
    %v477 = vpow.pop %v476
    %v478 = vadd.f32 %v477, 1.0
    %v479 = vrcp.pop %v478
    %v480 = vmul.f32 1.0, %v479
    %v482 = vrot.slane %v474, 2
    %v484 = vtanh.pop %v482
    %485 = vrot.lane.b32.xlu0 %v474, 64
    %v486 = vpop.permute.xlu0 %485
    %v487 = vrot.slane %v486, 2
    %v489 = vxor.u32 %v487, 2147483648
    %v490 = vmul.f32 %v489, 1.442695
    %v491 = vpow.pop %v490
    %v492 = vadd.f32 %v491, 1.0
    %v493 = vrcp.pop %v492
    %v494 = vmul.f32 1.0, %v493
    %v497 = vunpack.c.l.s4 1983009808
    %v498 = vunpack.c.0.s8 %v497
    %v499 = vlaneseq
    %v500 = vshrl.u32 %v499, 7
    %v501 = vsub.s32 %v498, %v500
    %v502 = vrot.slane %v386, %v501
    %503 = vrot.lane.b32.xlu0 %v502, 64
    %v504 = vpop.permute.xlu0 %503
    %v506 = vmul.f32 %v480, %v504
    %v507 = vmul.f32 %v480, %v484
    %509 = vrot.lane.b32.xlu0 %v507, 64
    %v510 = vpop.permute.xlu0 %509
    %v512 = vadd.f32 %v506, %v510
    %v513 = vtanh.pop %v512
    %515 = vrot.lane.b32.xlu0 %v513, 64
    %v516 = vpop.permute.xlu0 %515
    %v518 = vmul.f32 %v494, %v516
    %s519 = sadd.s32 %s73, 2
    %s520 = ssub.s32 5, %s73
    %v521 = vstv %s519
    %v522 = vstv %s520
    %v523 = vsel %vm72, %v521, %v522
    %vm524 = vcmp.ge.s32.totalorder %v523, 0
    %vm525 = vcmp.lt.s32.totalorder %v523, %v69
    %vm526 = vmand %vm524, %vm525
    %v527 = vsel %vm526, %v518, 0.0
    %s528 = scalar_lea.vmem [#allocation9], 4
    %529 = vst.msk [vmem:[%s528] sm:$0x3] %vm216, %v527
    %v530 = vsel %vm526, %v518, %v374
    %v533 = vunpack.c.l.s4 1983009808
    %v534 = vunpack.c.0.s8 %v533
    %v535 = vlaneseq
    %v536 = vshrl.u32 %v535, 7
    %v537 = vsub.s32 %v534, %v536
    %v538 = vrot.slane %v512, %v537
    %539 = vrot.lane.b32.xlu0 %v538, 64
    %v540 = vpop.permute.xlu0 %539
    %v542 = vsel %vm526, %v540, %v386
    %s543 = scalar_lea.vmem [#allocation4], 12
    %v544 = vld [vmem:[%s543] sm:$0xf]
    %v546 = vsel %vm77, %v530, 0
    %548 = vmatprep.subr.mxu0 %v51
    %549 = vmatpush1.msra.mxu0 %v50
    %550 = vmatprep.subr.mxu0 %v53
    %551 = vmatpush1.msra.mxu0 %v52
    %552 = vmatprep.subr.mxu0 %v55
    %553 = vmatpush1.msra.mxu0 %v54
    %554 = vmatprep.subr.mxu0 %v57
    %555 = vmatpush1.msra.mxu0 %v56
    %556 = vmatprep.subr.mxu0 %v59
    %557 = vmatpush1.msra.mxu0 %v58
    %558 = vmatprep.subr.mxu0 %v61
    %559 = vmatpush1.msra.mxu0 %v60
    %560 = vmatprep.subr.mxu0 %v63
    %561 = vmatpush1.msra.mxu0 %v62
    %562 = vmatprep.subr.mxu0 %v65
    %563 = vmatpush1.msra.mxu0 %v64
    %564 = vmatprep.subr.mxu0 0.0
    %565 = vmatpush1.msra.mxu0 0.0
    %566 = vmatprep.subr.mxu0 0.0
    %567 = vmatpush1.msra.mxu0 0.0
    %568 = vmatprep.subr.mxu0 0.0
    %569 = vmatpush1.msra.mxu0 0.0
    %570 = vmatprep.subr.mxu0 0.0
    %571 = vmatpush1.msra.mxu0 0.0
    %572 = vmatprep.subr.mxu0 0.0
    %573 = vmatpush1.msra.mxu0 0.0
    %574 = vmatprep.subr.mxu0 0.0
    %575 = vmatpush1.msra.mxu0 0.0
    %576 = vmatprep.subr.mxu0 0.0
    %577 = vmatpush1.msra.mxu0 0.0
    %578 = vmatprep.subr.mxu0 0.0
    %579 = vmatpush1.msra.mxu0 0.0
    %580 = vmatprep.subr.mxu0 0.0
    %581 = vmatpush1.msra.mxu0 0.0
    %582 = vmatprep.subr.mxu0 0.0
    %583 = vmatpush1.msra.mxu0 0.0
    %584 = vmatprep.subr.mxu0 0.0
    %585 = vmatpush1.msra.mxu0 0.0
    %586 = vmatprep.subr.mxu0 0.0
    %587 = vmatpush1.msra.mxu0 0.0
    %588 = vmatprep.subr.mxu0 0.0
    %589 = vmatpush1.msra.mxu0 0.0
    %590 = vmatprep.subr.mxu0 0.0
    %591 = vmatpush1.msra.mxu0 0.0
    %592 = vmatprep.subr.mxu0 0.0
    %593 = vmatpush1.msra.mxu0 0.0
    %594 = vmatprep.subr.mxu0 0.0
    %595 = vmatpush1.msra.mxu0 0.0
    %596 = vmatprep.subr.mxu0 0.0
    %597 = vmatpush1.msra.mxu0 0.0
    %598 = vmatprep.subr.mxu0 0.0
    %599 = vmatpush1.msra.mxu0 0.0
    %600 = vmatprep.subr.mxu0 0.0
    %601 = vmatpush1.msra.mxu0 0.0
    %602 = vmatprep.subr.mxu0 0.0
    %603 = vmatpush1.msra.mxu0 0.0
    %604 = vmatprep.subr.mxu0 0.0
    %605 = vmatpush1.msra.mxu0 0.0
    %606 = vmatprep.subr.mxu0 0.0
    %607 = vmatpush1.msra.mxu0 0.0
    %608 = vmatprep.subr.mxu0 0.0
    %609 = vmatpush1.msra.mxu0 0.0
    %610 = vmatprep.subr.mxu0 0.0
    %611 = vmatpush1.msra.mxu0 0.0
    %612 = vmatprep.mubr.f32.mxu0 0.0
    %613 = vmatmul.mubr.f32.gmra.mrb[0].mxu0 %v546
    %v614 = vpop.f32.mrb[0].mxu0
    %v615 = vadd.f32 0.0, %v614
    %v616 = vpop.f32.mrb[0].mxu0
    %v617 = vadd.f32 0.0, %v616
    %618 = vdwg.mxu0
    %v621 = vcombine.low %v615, %v617
    %v623 = vunpack.c.l.s4 1983009808
    %v624 = vunpack.c.0.s8 %v623
    %v625 = vlaneseq
    %v626 = vshrl.u32 %v625, 7
    %v627 = vsub.s32 %v624, %v626
    %v628 = vrot.slane %v621, %v627
    %v630 = vadd.f32 %v544, %v628
    %v631 = vxor.u32 %v630, 2147483648
    %v632 = vmul.f32 %v631, 1.442695
    %v633 = vpow.pop %v632
    %v634 = vadd.f32 %v633, 1.0
    %v635 = vrcp.pop %v634
    %v636 = vmul.f32 1.0, %v635
    %v638 = vrot.slane %v630, 2
    %v640 = vtanh.pop %v638
    %641 = vrot.lane.b32.xlu0 %v630, 64
    %v642 = vpop.permute.xlu0 %641
    %v643 = vrot.slane %v642, 2
    %v645 = vxor.u32 %v643, 2147483648
    %v646 = vmul.f32 %v645, 1.442695
    %v647 = vpow.pop %v646
    %v648 = vadd.f32 %v647, 1.0
    %v649 = vrcp.pop %v648
    %v650 = vmul.f32 1.0, %v649
    %v653 = vunpack.c.l.s4 1983009808
    %v654 = vunpack.c.0.s8 %v653
    %v655 = vlaneseq
    %v656 = vshrl.u32 %v655, 7
    %v657 = vsub.s32 %v654, %v656
    %v658 = vrot.slane %v542, %v657
    %659 = vrot.lane.b32.xlu0 %v658, 64
    %v660 = vpop.permute.xlu0 %659
    %v662 = vmul.f32 %v636, %v660
    %v663 = vmul.f32 %v636, %v640
    %665 = vrot.lane.b32.xlu0 %v663, 64
    %v666 = vpop.permute.xlu0 %665
    %v668 = vadd.f32 %v662, %v666
    %v669 = vtanh.pop %v668
    %671 = vrot.lane.b32.xlu0 %v669, 64
    %v672 = vpop.permute.xlu0 %671
    %v674 = vmul.f32 %v650, %v672
    %s675 = sadd.s32 %s73, 3
    %s676 = ssub.s32 4, %s73
    %v677 = vstv %s675
    %v678 = vstv %s676
    %v679 = vsel %vm72, %v677, %v678
    %vm680 = vcmp.ge.s32.totalorder %v679, 0
    %vm681 = vcmp.lt.s32.totalorder %v679, %v69
    %vm682 = vmand %vm680, %vm681
    %v683 = vsel %vm682, %v674, 0.0
    %s684 = scalar_lea.vmem [#allocation9], 6
    %685 = vst.msk [vmem:[%s684] sm:$0x3] %vm216, %v683
    %v686 = vsel %vm682, %v674, %v530
    %v689 = vunpack.c.l.s4 1983009808
    %v690 = vunpack.c.0.s8 %v689
    %v691 = vlaneseq
    %v692 = vshrl.u32 %v691, 7
    %v693 = vsub.s32 %v690, %v692
    %v694 = vrot.slane %v668, %v693
    %695 = vrot.lane.b32.xlu0 %v694, 64
    %v696 = vpop.permute.xlu0 %695
    %v698 = vsel %vm682, %v696, %v542
    %s699 = scalar_lea.vmem [#allocation4], 16
    %v700 = vld [vmem:[%s699] sm:$0xf]
    %v702 = vsel %vm77, %v686, 0
    %704 = vmatprep.subr.mxu0 %v51
    %705 = vmatpush1.msra.mxu0 %v50
    %706 = vmatprep.subr.mxu0 %v53
    %707 = vmatpush1.msra.mxu0 %v52
    %708 = vmatprep.subr.mxu0 %v55
    %709 = vmatpush1.msra.mxu0 %v54
    %710 = vmatprep.subr.mxu0 %v57
    %711 = vmatpush1.msra.mxu0 %v56
    %712 = vmatprep.subr.mxu0 %v59
    %713 = vmatpush1.msra.mxu0 %v58
    %714 = vmatprep.subr.mxu0 %v61
    %715 = vmatpush1.msra.mxu0 %v60
    %716 = vmatprep.subr.mxu0 %v63
    %717 = vmatpush1.msra.mxu0 %v62
    %718 = vmatprep.subr.mxu0 %v65
    %719 = vmatpush1.msra.mxu0 %v64
    %720 = vmatprep.subr.mxu0 0.0
    %721 = vmatpush1.msra.mxu0 0.0
    %722 = vmatprep.subr.mxu0 0.0
    %723 = vmatpush1.msra.mxu0 0.0
    %724 = vmatprep.subr.mxu0 0.0
    %725 = vmatpush1.msra.mxu0 0.0
    %726 = vmatprep.subr.mxu0 0.0
    %727 = vmatpush1.msra.mxu0 0.0
    %728 = vmatprep.subr.mxu0 0.0
    %729 = vmatpush1.msra.mxu0 0.0
    %730 = vmatprep.subr.mxu0 0.0
    %731 = vmatpush1.msra.mxu0 0.0
    %732 = vmatprep.subr.mxu0 0.0
    %733 = vmatpush1.msra.mxu0 0.0
    %734 = vmatprep.subr.mxu0 0.0
    %735 = vmatpush1.msra.mxu0 0.0
    %736 = vmatprep.subr.mxu0 0.0
    %737 = vmatpush1.msra.mxu0 0.0
    %738 = vmatprep.subr.mxu0 0.0
    %739 = vmatpush1.msra.mxu0 0.0
    %740 = vmatprep.subr.mxu0 0.0
    %741 = vmatpush1.msra.mxu0 0.0
    %742 = vmatprep.subr.mxu0 0.0
    %743 = vmatpush1.msra.mxu0 0.0
    %744 = vmatprep.subr.mxu0 0.0
    %745 = vmatpush1.msra.mxu0 0.0
    %746 = vmatprep.subr.mxu0 0.0
    %747 = vmatpush1.msra.mxu0 0.0
    %748 = vmatprep.subr.mxu0 0.0
    %749 = vmatpush1.msra.mxu0 0.0
    %750 = vmatprep.subr.mxu0 0.0
    %751 = vmatpush1.msra.mxu0 0.0
    %752 = vmatprep.subr.mxu0 0.0
    %753 = vmatpush1.msra.mxu0 0.0
    %754 = vmatprep.subr.mxu0 0.0
    %755 = vmatpush1.msra.mxu0 0.0
    %756 = vmatprep.subr.mxu0 0.0
    %757 = vmatpush1.msra.mxu0 0.0
    %758 = vmatprep.subr.mxu0 0.0
    %759 = vmatpush1.msra.mxu0 0.0
    %760 = vmatprep.subr.mxu0 0.0
    %761 = vmatpush1.msra.mxu0 0.0
    %762 = vmatprep.subr.mxu0 0.0
    %763 = vmatpush1.msra.mxu0 0.0
    %764 = vmatprep.subr.mxu0 0.0
    %765 = vmatpush1.msra.mxu0 0.0
    %766 = vmatprep.subr.mxu0 0.0
    %767 = vmatpush1.msra.mxu0 0.0
    %768 = vmatprep.mubr.f32.mxu0 0.0
    %769 = vmatmul.mubr.f32.gmra.mrb[0].mxu0 %v702
    %v770 = vpop.f32.mrb[0].mxu0
    %v771 = vadd.f32 0.0, %v770
    %v772 = vpop.f32.mrb[0].mxu0
    %v773 = vadd.f32 0.0, %v772
    %774 = vdwg.mxu0
    %v777 = vcombine.low %v771, %v773
    %v779 = vunpack.c.l.s4 1983009808
    %v780 = vunpack.c.0.s8 %v779
    %v781 = vlaneseq
    %v782 = vshrl.u32 %v781, 7
    %v783 = vsub.s32 %v780, %v782
    %v784 = vrot.slane %v777, %v783
    %v786 = vadd.f32 %v700, %v784
    %v787 = vxor.u32 %v786, 2147483648
    %v788 = vmul.f32 %v787, 1.442695
    %v789 = vpow.pop %v788
    %v790 = vadd.f32 %v789, 1.0
    %v791 = vrcp.pop %v790
    %v792 = vmul.f32 1.0, %v791
    %v794 = vrot.slane %v786, 2
    %v796 = vtanh.pop %v794
    %797 = vrot.lane.b32.xlu0 %v786, 64
    %v798 = vpop.permute.xlu0 %797
    %v799 = vrot.slane %v798, 2
    %v801 = vxor.u32 %v799, 2147483648
    %v802 = vmul.f32 %v801, 1.442695
    %v803 = vpow.pop %v802
    %v804 = vadd.f32 %v803, 1.0
    %v805 = vrcp.pop %v804
    %v806 = vmul.f32 1.0, %v805
    %v809 = vunpack.c.l.s4 1983009808
    %v810 = vunpack.c.0.s8 %v809
    %v811 = vlaneseq
    %v812 = vshrl.u32 %v811, 7
    %v813 = vsub.s32 %v810, %v812
    %v814 = vrot.slane %v698, %v813
    %815 = vrot.lane.b32.xlu0 %v814, 64
    %v816 = vpop.permute.xlu0 %815
    %v818 = vmul.f32 %v792, %v816
    %v819 = vmul.f32 %v792, %v796
    %821 = vrot.lane.b32.xlu0 %v819, 64
    %v822 = vpop.permute.xlu0 %821
    %v824 = vadd.f32 %v818, %v822
    %v825 = vtanh.pop %v824
    %827 = vrot.lane.b32.xlu0 %v825, 64
    %v828 = vpop.permute.xlu0 %827
    %v830 = vmul.f32 %v806, %v828
    %s831 = sadd.s32 %s73, 4
    %s832 = ssub.s32 3, %s73
    %v833 = vstv %s831
    %v834 = vstv %s832
    %v835 = vsel %vm72, %v833, %v834
    %vm836 = vcmp.ge.s32.totalorder %v835, 0
    %vm837 = vcmp.lt.s32.totalorder %v835, %v69
    %vm838 = vmand %vm836, %vm837
    %v839 = vsel %vm838, %v830, 0.0
    %s840 = scalar_lea.vmem [#allocation9], 8
    %841 = vst.msk [vmem:[%s840] sm:$0x3] %vm216, %v839
    %v842 = vsel %vm838, %v830, %v686
    %v845 = vunpack.c.l.s4 1983009808
    %v846 = vunpack.c.0.s8 %v845
    %v847 = vlaneseq
    %v848 = vshrl.u32 %v847, 7
    %v849 = vsub.s32 %v846, %v848
    %v850 = vrot.slane %v824, %v849
    %851 = vrot.lane.b32.xlu0 %v850, 64
    %v852 = vpop.permute.xlu0 %851
    %v854 = vsel %vm838, %v852, %v698
    %s855 = scalar_lea.vmem [#allocation4], 20
    %v856 = vld [vmem:[%s855] sm:$0xf]
    %v858 = vsel %vm77, %v842, 0
    %860 = vmatprep.subr.mxu0 %v51
    %861 = vmatpush1.msra.mxu0 %v50
    %862 = vmatprep.subr.mxu0 %v53
    %863 = vmatpush1.msra.mxu0 %v52
    %864 = vmatprep.subr.mxu0 %v55
    %865 = vmatpush1.msra.mxu0 %v54
    %866 = vmatprep.subr.mxu0 %v57
    %867 = vmatpush1.msra.mxu0 %v56
    %868 = vmatprep.subr.mxu0 %v59
    %869 = vmatpush1.msra.mxu0 %v58
    %870 = vmatprep.subr.mxu0 %v61
    %871 = vmatpush1.msra.mxu0 %v60
    %872 = vmatprep.subr.mxu0 %v63
    %873 = vmatpush1.msra.mxu0 %v62
    %874 = vmatprep.subr.mxu0 %v65
    %875 = vmatpush1.msra.mxu0 %v64
    %876 = vmatprep.subr.mxu0 0.0
    %877 = vmatpush1.msra.mxu0 0.0
    %878 = vmatprep.subr.mxu0 0.0
    %879 = vmatpush1.msra.mxu0 0.0
    %880 = vmatprep.subr.mxu0 0.0
    %881 = vmatpush1.msra.mxu0 0.0
    %882 = vmatprep.subr.mxu0 0.0
    %883 = vmatpush1.msra.mxu0 0.0
    %884 = vmatprep.subr.mxu0 0.0
    %885 = vmatpush1.msra.mxu0 0.0
    %886 = vmatprep.subr.mxu0 0.0
    %887 = vmatpush1.msra.mxu0 0.0
    %888 = vmatprep.subr.mxu0 0.0
    %889 = vmatpush1.msra.mxu0 0.0
    %890 = vmatprep.subr.mxu0 0.0
    %891 = vmatpush1.msra.mxu0 0.0
    %892 = vmatprep.subr.mxu0 0.0
    %893 = vmatpush1.msra.mxu0 0.0
    %894 = vmatprep.subr.mxu0 0.0
    %895 = vmatpush1.msra.mxu0 0.0
    %896 = vmatprep.subr.mxu0 0.0
    %897 = vmatpush1.msra.mxu0 0.0
    %898 = vmatprep.subr.mxu0 0.0
    %899 = vmatpush1.msra.mxu0 0.0
    %900 = vmatprep.subr.mxu0 0.0
    %901 = vmatpush1.msra.mxu0 0.0
    %902 = vmatprep.subr.mxu0 0.0
    %903 = vmatpush1.msra.mxu0 0.0
    %904 = vmatprep.subr.mxu0 0.0
    %905 = vmatpush1.msra.mxu0 0.0
    %906 = vmatprep.subr.mxu0 0.0
    %907 = vmatpush1.msra.mxu0 0.0
    %908 = vmatprep.subr.mxu0 0.0
    %909 = vmatpush1.msra.mxu0 0.0
    %910 = vmatprep.subr.mxu0 0.0
    %911 = vmatpush1.msra.mxu0 0.0
    %912 = vmatprep.subr.mxu0 0.0
    %913 = vmatpush1.msra.mxu0 0.0
    %914 = vmatprep.subr.mxu0 0.0
    %915 = vmatpush1.msra.mxu0 0.0
    %916 = vmatprep.subr.mxu0 0.0
    %917 = vmatpush1.msra.mxu0 0.0
    %918 = vmatprep.subr.mxu0 0.0
    %919 = vmatpush1.msra.mxu0 0.0
    %920 = vmatprep.subr.mxu0 0.0
    %921 = vmatpush1.msra.mxu0 0.0
    %922 = vmatprep.subr.mxu0 0.0
    %923 = vmatpush1.msra.mxu0 0.0
    %924 = vmatprep.mubr.f32.mxu0 0.0
    %925 = vmatmul.mubr.f32.gmra.mrb[0].mxu0 %v858
    %v926 = vpop.f32.mrb[0].mxu0
    %v927 = vadd.f32 0.0, %v926
    %v928 = vpop.f32.mrb[0].mxu0
    %v929 = vadd.f32 0.0, %v928
    %930 = vdwg.mxu0
    %v933 = vcombine.low %v927, %v929
    %v935 = vunpack.c.l.s4 1983009808
    %v936 = vunpack.c.0.s8 %v935
    %v937 = vlaneseq
    %v938 = vshrl.u32 %v937, 7
    %v939 = vsub.s32 %v936, %v938
    %v940 = vrot.slane %v933, %v939
    %v942 = vadd.f32 %v856, %v940
    %v943 = vxor.u32 %v942, 2147483648
    %v944 = vmul.f32 %v943, 1.442695
    %v945 = vpow.pop %v944
    %v946 = vadd.f32 %v945, 1.0
    %v947 = vrcp.pop %v946
    %v948 = vmul.f32 1.0, %v947
    %v950 = vrot.slane %v942, 2
    %v952 = vtanh.pop %v950
    %953 = vrot.lane.b32.xlu0 %v942, 64
    %v954 = vpop.permute.xlu0 %953
    %v955 = vrot.slane %v954, 2
    %v957 = vxor.u32 %v955, 2147483648
    %v958 = vmul.f32 %v957, 1.442695
    %v959 = vpow.pop %v958
    %v960 = vadd.f32 %v959, 1.0
    %v961 = vrcp.pop %v960
    %v962 = vmul.f32 1.0, %v961
    %v965 = vunpack.c.l.s4 1983009808
    %v966 = vunpack.c.0.s8 %v965
    %v967 = vlaneseq
    %v968 = vshrl.u32 %v967, 7
    %v969 = vsub.s32 %v966, %v968
    %v970 = vrot.slane %v854, %v969
    %971 = vrot.lane.b32.xlu0 %v970, 64
    %v972 = vpop.permute.xlu0 %971
    %v974 = vmul.f32 %v948, %v972
    %v975 = vmul.f32 %v948, %v952
    %977 = vrot.lane.b32.xlu0 %v975, 64
    %v978 = vpop.permute.xlu0 %977
    %v980 = vadd.f32 %v974, %v978
    %v981 = vtanh.pop %v980
    %983 = vrot.lane.b32.xlu0 %v981, 64
    %v984 = vpop.permute.xlu0 %983
    %v986 = vmul.f32 %v962, %v984
    %s987 = sadd.s32 %s73, 5
    %s988 = ssub.s32 2, %s73
    %v989 = vstv %s987
    %v990 = vstv %s988
    %v991 = vsel %vm72, %v989, %v990
    %vm992 = vcmp.ge.s32.totalorder %v991, 0
    %vm993 = vcmp.lt.s32.totalorder %v991, %v69
    %vm994 = vmand %vm992, %vm993
    %v995 = vsel %vm994, %v986, 0.0
    %s996 = scalar_lea.vmem [#allocation9], 10
    %997 = vst.msk [vmem:[%s996] sm:$0x3] %vm216, %v995
    %v998 = vsel %vm994, %v986, %v842
    %v1001 = vunpack.c.l.s4 1983009808
    %v1002 = vunpack.c.0.s8 %v1001
    %v1003 = vlaneseq
    %v1004 = vshrl.u32 %v1003, 7
    %v1005 = vsub.s32 %v1002, %v1004
    %v1006 = vrot.slane %v980, %v1005
    %1007 = vrot.lane.b32.xlu0 %v1006, 64
    %v1008 = vpop.permute.xlu0 %1007
    %v1010 = vsel %vm994, %v1008, %v854
    %s1011 = scalar_lea.vmem [#allocation4], 24
    %v1012 = vld [vmem:[%s1011] sm:$0xf]
    %v1014 = vsel %vm77, %v998, 0
    %1016 = vmatprep.subr.mxu0 %v51
    %1017 = vmatpush1.msra.mxu0 %v50
    %1018 = vmatprep.subr.mxu0 %v53
    %1019 = vmatpush1.msra.mxu0 %v52
    %1020 = vmatprep.subr.mxu0 %v55
    %1021 = vmatpush1.msra.mxu0 %v54
    %1022 = vmatprep.subr.mxu0 %v57
    %1023 = vmatpush1.msra.mxu0 %v56
    %1024 = vmatprep.subr.mxu0 %v59
    %1025 = vmatpush1.msra.mxu0 %v58
    %1026 = vmatprep.subr.mxu0 %v61
    %1027 = vmatpush1.msra.mxu0 %v60
    %1028 = vmatprep.subr.mxu0 %v63
    %1029 = vmatpush1.msra.mxu0 %v62
    %1030 = vmatprep.subr.mxu0 %v65
    %1031 = vmatpush1.msra.mxu0 %v64
    %1032 = vmatprep.subr.mxu0 0.0
    %1033 = vmatpush1.msra.mxu0 0.0
    %1034 = vmatprep.subr.mxu0 0.0
    %1035 = vmatpush1.msra.mxu0 0.0
    %1036 = vmatprep.subr.mxu0 0.0
    %1037 = vmatpush1.msra.mxu0 0.0
    %1038 = vmatprep.subr.mxu0 0.0
    %1039 = vmatpush1.msra.mxu0 0.0
    %1040 = vmatprep.subr.mxu0 0.0
    %1041 = vmatpush1.msra.mxu0 0.0
    %1042 = vmatprep.subr.mxu0 0.0
    %1043 = vmatpush1.msra.mxu0 0.0
    %1044 = vmatprep.subr.mxu0 0.0
    %1045 = vmatpush1.msra.mxu0 0.0
    %1046 = vmatprep.subr.mxu0 0.0
    %1047 = vmatpush1.msra.mxu0 0.0
    %1048 = vmatprep.subr.mxu0 0.0
    %1049 = vmatpush1.msra.mxu0 0.0
    %1050 = vmatprep.subr.mxu0 0.0
    %1051 = vmatpush1.msra.mxu0 0.0
    %1052 = vmatprep.subr.mxu0 0.0
    %1053 = vmatpush1.msra.mxu0 0.0
    %1054 = vmatprep.subr.mxu0 0.0
    %1055 = vmatpush1.msra.mxu0 0.0
    %1056 = vmatprep.subr.mxu0 0.0
    %1057 = vmatpush1.msra.mxu0 0.0
    %1058 = vmatprep.subr.mxu0 0.0
    %1059 = vmatpush1.msra.mxu0 0.0
    %1060 = vmatprep.subr.mxu0 0.0
    %1061 = vmatpush1.msra.mxu0 0.0
    %1062 = vmatprep.subr.mxu0 0.0
    %1063 = vmatpush1.msra.mxu0 0.0
    %1064 = vmatprep.subr.mxu0 0.0
    %1065 = vmatpush1.msra.mxu0 0.0
    %1066 = vmatprep.subr.mxu0 0.0
    %1067 = vmatpush1.msra.mxu0 0.0
    %1068 = vmatprep.subr.mxu0 0.0
    %1069 = vmatpush1.msra.mxu0 0.0
    %1070 = vmatprep.subr.mxu0 0.0
    %1071 = vmatpush1.msra.mxu0 0.0
    %1072 = vmatprep.subr.mxu0 0.0
    %1073 = vmatpush1.msra.mxu0 0.0
    %1074 = vmatprep.subr.mxu0 0.0
    %1075 = vmatpush1.msra.mxu0 0.0
    %1076 = vmatprep.subr.mxu0 0.0
    %1077 = vmatpush1.msra.mxu0 0.0
    %1078 = vmatprep.subr.mxu0 0.0
    %1079 = vmatpush1.msra.mxu0 0.0
    %1080 = vmatprep.mubr.f32.mxu0 0.0
    %1081 = vmatmul.mubr.f32.gmra.mrb[0].mxu0 %v1014
    %v1082 = vpop.f32.mrb[0].mxu0
    %v1083 = vadd.f32 0.0, %v1082
    %v1084 = vpop.f32.mrb[0].mxu0
    %v1085 = vadd.f32 0.0, %v1084
    %1086 = vdwg.mxu0
    %v1089 = vcombine.low %v1083, %v1085
    %v1091 = vunpack.c.l.s4 1983009808
    %v1092 = vunpack.c.0.s8 %v1091
    %v1093 = vlaneseq
    %v1094 = vshrl.u32 %v1093, 7
    %v1095 = vsub.s32 %v1092, %v1094
    %v1096 = vrot.slane %v1089, %v1095
    %v1098 = vadd.f32 %v1012, %v1096
    %v1099 = vxor.u32 %v1098, 2147483648
    %v1100 = vmul.f32 %v1099, 1.442695
    %v1101 = vpow.pop %v1100
    %v1102 = vadd.f32 %v1101, 1.0
    %v1103 = vrcp.pop %v1102
    %v1104 = vmul.f32 1.0, %v1103
    %v1106 = vrot.slane %v1098, 2
    %v1108 = vtanh.pop %v1106
    %1109 = vrot.lane.b32.xlu0 %v1098, 64
    %v1110 = vpop.permute.xlu0 %1109
    %v1111 = vrot.slane %v1110, 2
    %v1113 = vxor.u32 %v1111, 2147483648
    %v1114 = vmul.f32 %v1113, 1.442695
    %v1115 = vpow.pop %v1114
    %v1116 = vadd.f32 %v1115, 1.0
    %v1117 = vrcp.pop %v1116
    %v1118 = vmul.f32 1.0, %v1117
    %v1121 = vunpack.c.l.s4 1983009808
    %v1122 = vunpack.c.0.s8 %v1121
    %v1123 = vlaneseq
    %v1124 = vshrl.u32 %v1123, 7
    %v1125 = vsub.s32 %v1122, %v1124
    %v1126 = vrot.slane %v1010, %v1125
    %1127 = vrot.lane.b32.xlu0 %v1126, 64
    %v1128 = vpop.permute.xlu0 %1127
    %v1130 = vmul.f32 %v1104, %v1128
    %v1131 = vmul.f32 %v1104, %v1108
    %1133 = vrot.lane.b32.xlu0 %v1131, 64
    %v1134 = vpop.permute.xlu0 %1133
    %v1136 = vadd.f32 %v1130, %v1134
    %v1137 = vtanh.pop %v1136
    %1139 = vrot.lane.b32.xlu0 %v1137, 64
    %v1140 = vpop.permute.xlu0 %1139
    %v1142 = vmul.f32 %v1118, %v1140
    %s1143 = sadd.s32 %s73, 6
    %s1144 = ssub.s32 1, %s73
    %v1145 = vstv %s1143
    %v1146 = vstv %s1144
    %v1147 = vsel %vm72, %v1145, %v1146
    %vm1148 = vcmp.ge.s32.totalorder %v1147, 0
    %vm1149 = vcmp.lt.s32.totalorder %v1147, %v69
    %vm1150 = vmand %vm1148, %vm1149
    %v1151 = vsel %vm1150, %v1142, 0.0
    %s1152 = scalar_lea.vmem [#allocation9], 12
    %1153 = vst.msk [vmem:[%s1152] sm:$0x3] %vm216, %v1151
    %v1154 = vsel %vm1150, %v1142, %v998
    %v1157 = vunpack.c.l.s4 1983009808
    %v1158 = vunpack.c.0.s8 %v1157
    %v1159 = vlaneseq
    %v1160 = vshrl.u32 %v1159, 7
    %v1161 = vsub.s32 %v1158, %v1160
    %v1162 = vrot.slane %v1136, %v1161
    %1163 = vrot.lane.b32.xlu0 %v1162, 64
    %v1164 = vpop.permute.xlu0 %1163
    %v1166 = vsel %vm1150, %v1164, %v1010
    %s1167 = scalar_lea.vmem [#allocation4], 28
    %v1168 = vld [vmem:[%s1167] sm:$0xf]
    %v1170 = vsel %vm77, %v1154, 0
    %1172 = vmatprep.subr.mxu0 %v51
    %1173 = vmatpush1.msra.mxu0 %v50
    %1174 = vmatprep.subr.mxu0 %v53
    %1175 = vmatpush1.msra.mxu0 %v52
    %1176 = vmatprep.subr.mxu0 %v55
    %1177 = vmatpush1.msra.mxu0 %v54
    %1178 = vmatprep.subr.mxu0 %v57
    %1179 = vmatpush1.msra.mxu0 %v56
    %1180 = vmatprep.subr.mxu0 %v59
    %1181 = vmatpush1.msra.mxu0 %v58
    %1182 = vmatprep.subr.mxu0 %v61
    %1183 = vmatpush1.msra.mxu0 %v60
    %1184 = vmatprep.subr.mxu0 %v63
    %1185 = vmatpush1.msra.mxu0 %v62
    %1186 = vmatprep.subr.mxu0 %v65
    %1187 = vmatpush1.msra.mxu0 %v64
    %1188 = vmatprep.subr.mxu0 0.0
    %1189 = vmatpush1.msra.mxu0 0.0
    %1190 = vmatprep.subr.mxu0 0.0
    %1191 = vmatpush1.msra.mxu0 0.0
    %1192 = vmatprep.subr.mxu0 0.0
    %1193 = vmatpush1.msra.mxu0 0.0
    %1194 = vmatprep.subr.mxu0 0.0
    %1195 = vmatpush1.msra.mxu0 0.0
    %1196 = vmatprep.subr.mxu0 0.0
    %1197 = vmatpush1.msra.mxu0 0.0
    %1198 = vmatprep.subr.mxu0 0.0
    %1199 = vmatpush1.msra.mxu0 0.0
    %1200 = vmatprep.subr.mxu0 0.0
    %1201 = vmatpush1.msra.mxu0 0.0
    %1202 = vmatprep.subr.mxu0 0.0
    %1203 = vmatpush1.msra.mxu0 0.0
    %1204 = vmatprep.subr.mxu0 0.0
    %1205 = vmatpush1.msra.mxu0 0.0
    %1206 = vmatprep.subr.mxu0 0.0
    %1207 = vmatpush1.msra.mxu0 0.0
    %1208 = vmatprep.subr.mxu0 0.0
    %1209 = vmatpush1.msra.mxu0 0.0
    %1210 = vmatprep.subr.mxu0 0.0
    %1211 = vmatpush1.msra.mxu0 0.0
    %1212 = vmatprep.subr.mxu0 0.0
    %1213 = vmatpush1.msra.mxu0 0.0
    %1214 = vmatprep.subr.mxu0 0.0
    %1215 = vmatpush1.msra.mxu0 0.0
    %1216 = vmatprep.subr.mxu0 0.0
    %1217 = vmatpush1.msra.mxu0 0.0
    %1218 = vmatprep.subr.mxu0 0.0
    %1219 = vmatpush1.msra.mxu0 0.0
    %1220 = vmatprep.subr.mxu0 0.0
    %1221 = vmatpush1.msra.mxu0 0.0
    %1222 = vmatprep.subr.mxu0 0.0
    %1223 = vmatpush1.msra.mxu0 0.0
    %1224 = vmatprep.subr.mxu0 0.0
    %1225 = vmatpush1.msra.mxu0 0.0
    %1226 = vmatprep.subr.mxu0 0.0
    %1227 = vmatpush1.msra.mxu0 0.0
    %1228 = vmatprep.subr.mxu0 0.0
    %1229 = vmatpush1.msra.mxu0 0.0
    %1230 = vmatprep.subr.mxu0 0.0
    %1231 = vmatpush1.msra.mxu0 0.0
    %1232 = vmatprep.subr.mxu0 0.0
    %1233 = vmatpush1.msra.mxu0 0.0
    %1234 = vmatprep.subr.mxu0 0.0
    %1235 = vmatpush1.msra.mxu0 0.0
    %1236 = vmatprep.mubr.f32.mxu0 0.0
    %1237 = vmatmul.mubr.f32.gmra.mrb[0].mxu0 %v1170
    %v1238 = vpop.f32.mrb[0].mxu0
    %v1239 = vadd.f32 0.0, %v1238
    %v1240 = vpop.f32.mrb[0].mxu0
    %v1241 = vadd.f32 0.0, %v1240
    %1242 = vdwg.mxu0
    %v1245 = vcombine.low %v1239, %v1241
    %v1247 = vunpack.c.l.s4 1983009808
    %v1248 = vunpack.c.0.s8 %v1247
    %v1249 = vlaneseq
    %v1250 = vshrl.u32 %v1249, 7
    %v1251 = vsub.s32 %v1248, %v1250
    %v1252 = vrot.slane %v1245, %v1251
    %v1254 = vadd.f32 %v1168, %v1252
    %v1255 = vxor.u32 %v1254, 2147483648
    %v1256 = vmul.f32 %v1255, 1.442695
    %v1257 = vpow.pop %v1256
    %v1258 = vadd.f32 %v1257, 1.0
    %v1259 = vrcp.pop %v1258
    %v1260 = vmul.f32 1.0, %v1259
    %v1262 = vrot.slane %v1254, 2
    %v1264 = vtanh.pop %v1262
    %1265 = vrot.lane.b32.xlu0 %v1254, 64
    %v1266 = vpop.permute.xlu0 %1265
    %v1267 = vrot.slane %v1266, 2
    %v1269 = vxor.u32 %v1267, 2147483648
    %v1270 = vmul.f32 %v1269, 1.442695
    %v1271 = vpow.pop %v1270
    %v1272 = vadd.f32 %v1271, 1.0
    %v1273 = vrcp.pop %v1272
    %v1274 = vmul.f32 1.0, %v1273
    %v1277 = vunpack.c.l.s4 1983009808
    %v1278 = vunpack.c.0.s8 %v1277
    %v1279 = vlaneseq
    %v1280 = vshrl.u32 %v1279, 7
    %v1281 = vsub.s32 %v1278, %v1280
    %v1282 = vrot.slane %v1166, %v1281
    %1283 = vrot.lane.b32.xlu0 %v1282, 64
    %v1284 = vpop.permute.xlu0 %1283
    %v1286 = vmul.f32 %v1260, %v1284
    %v1287 = vmul.f32 %v1260, %v1264
    %1289 = vrot.lane.b32.xlu0 %v1287, 64
    %v1290 = vpop.permute.xlu0 %1289
    %v1292 = vadd.f32 %v1286, %v1290
    %v1293 = vtanh.pop %v1292
    %1295 = vrot.lane.b32.xlu0 %v1293, 64
    %v1296 = vpop.permute.xlu0 %1295
    %v1298 = vmul.f32 %v1274, %v1296
    %s1299 = sadd.s32 %s73, 7
    %s1300 = ssub.s32 0, %s73
    %v1301 = vstv %s1299
    %v1302 = vstv %s1300
    %v1303 = vsel %vm72, %v1301, %v1302
    %vm1304 = vcmp.ge.s32.totalorder %v1303, 0
    %vm1305 = vcmp.lt.s32.totalorder %v1303, %v69
    %vm1306 = vmand %vm1304, %vm1305
    %v1307 = vsel %vm1306, %v1298, 0.0
    %s1308 = scalar_lea.vmem [#allocation9], 14
    %1309 = vst.msk [vmem:[%s1308] sm:$0x3] %vm216, %v1307
    %v1310 = vsel %vm1306, %v1298, %v1154
    %v1313 = vunpack.c.l.s4 1983009808
    %v1314 = vunpack.c.0.s8 %v1313
    %v1315 = vlaneseq
    %v1316 = vshrl.u32 %v1315, 7
    %v1317 = vsub.s32 %v1314, %v1316
    %v1318 = vrot.slane %v1292, %v1317
    %1319 = vrot.lane.b32.xlu0 %v1318, 64
    %v1320 = vpop.permute.xlu0 %1319
    %v1322 = vsel %vm1306, %v1320, %v1166
    %1323 = vst.msk [vmem:[#allocation2] sm:$0x3] %vm216, %v1310
    %1324 = vst.msk [vmem:[#allocation3] sm:$0x3] %vm216, %v1322
    // Predicated region
    $region26: #{tpu_custom_call.1} parent=1 // pred_check
      _
    $region27: #{tpu_custom_call.1} parent=1 // pred_check_branch
      %1326 = sbr.rel (0) target = $region29
    $region28: #{tpu_custom_call.1} parent=1 // pred_region
      %s1328 = ssub.s32 256, 256
      %1329 = vsyncadd [#allocation6], %s1328
      %s1330 = sshll.u32 [#allocation9], 4
      %s1331 = int_to_ptr.vmem [resolvable:$true] %s1330
      %1336 = dma.vmem_to_hbm [thread:$0]  %s1331, 256, %s3, [#allocation6], 32, 32, 2
    $region29: #{tpu_custom_call.1} parent=1 // pred_fallthru
      _
    // Predicated region
    $region30: #{tpu_custom_call.1} parent=1 // pred_check
      _
    $region31: #{tpu_custom_call.1} parent=1 // pred_check_branch
      %1338 = sbr.rel (0) target = $region33
    $region32: #{tpu_custom_call.1} parent=1 // pred_region
      %1339 = dma.done [#allocation6], 256
    $region33: #{tpu_custom_call.1} parent=1 // pred_fallthru
      _
    %1340 = vsyncpa [#allocation5], 1
    %1341 = vsyncpa [#allocation8], 1
    %1342 = vsyncpa [#allocation6], 1

</llo_original>
